<compile_context>
chip_gen: v7x
topology: tpu7x:2x2x1
jax: 0.10.0
libtpu: 0.0.40
codegen_flags: <defaults>
</compile_context>

<pallas_src>
import jax
import jax.numpy as jnp
from jax import lax
from jax.experimental import pallas as pl
from jax.experimental.pallas import tpu as pltpu


def _round_up(x, m):
    return (x + m - 1) // m * m


def _panda_stack_kernel(feat_ref, w_ref, p_ref, src_ref, dst_ref, ab_ref, out_ref):
    """Fused 3-layer GlobalAttention stack. All operands VMEM-resident."""
    n_layers = w_ref.shape[0]
    Ep = src_ref.shape[0]
    Np = feat_ref.shape[0]

    # One-hot incidence built in-kernel from edge indices (VPU compare).
    # Padded edges carry index -1 -> all-zero rows.
    node_ids = lax.broadcasted_iota(jnp.int32, (Ep, Np), 1)
    src_idx = src_ref[...]                                     # (Ep, 1) int32
    dst_idx = dst_ref[...]                                     # (Ep, 1) int32
    src_oh = (node_ids == src_idx).astype(jnp.float32)         # (Ep, Np)
    dst_oh = (node_ids == dst_idx).astype(jnp.float32)         # (Ep, Np)
    edge_valid = dst_idx >= 0                                   # (Ep, 1)

    x = feat_ref[...].astype(jnp.float32)                       # (Np, Fp)
    for l in range(n_layers):
        w = w_ref[l]                                            # (Fp, Fp)
        bias = p_ref[l, 0:1, :]                                 # (1, Fp)
        aw2 = p_ref[l, 1:3, :]                                  # (2, Fp): aw_src, aw_dst
        ab = ab_ref[l]                                          # scalar (SMEM)

        # Linear: t = x @ W + b                                 -> (Np, Fp)
        t = jnp.dot(x, w, preferred_element_type=jnp.float32) + bias

        # Per-node attention contributions on the MXU: (Np, 2) = t @ aw2^T
        a_nodes = lax.dot_general(t, aw2, (((1,), (1,)), ((), ())),
                                  preferred_element_type=jnp.float32)

        # Gather per edge via one-hot matvecs (MXU)             -> (Ep, 1)
        a_src_e = jnp.dot(src_oh, a_nodes[:, 0:1],
                          preferred_element_type=jnp.float32)
        a_dst_e = jnp.dot(dst_oh, a_nodes[:, 1:2],
                          preferred_element_type=jnp.float32)
        s = a_src_e + a_dst_e + ab
        s = jnp.where(s > 0, s, 0.2 * s)                        # leaky_relu(0.2)
        s = jnp.where(edge_valid, s, jnp.float32(-1e30))        # mask padded edges

        # Edge softmax grouped by destination node (fused, finite mask value).
        masked = jnp.where(dst_oh > 0, s, jnp.float32(-1e30))   # (Ep, Np)
        m = jnp.max(masked, axis=0, keepdims=True)              # (1, Np) per-dst max
        m_e = jnp.sum(dst_oh * m, axis=-1, keepdims=True)       # (Ep, 1) = m[dst(e)]
        ex = jnp.exp(s - m_e)                                    # EUP
        den = jnp.sum(dst_oh * ex, axis=0, keepdims=True)        # (1, Np)
        inv = jnp.where(den > 0, pl.reciprocal(den, approx=False),
                        jnp.float32(0.0))
        attn = ex * jnp.sum(dst_oh * inv, axis=-1, keepdims=True)  # (Ep, 1)

        # Messages and aggregation: out[n] = sum_{dst(e)=n} attn_e * t[src(e)]
        src_f = jnp.dot(src_oh, t, preferred_element_type=jnp.float32)  # (Ep, Fp)
        msg = attn * src_f
        # Contract the edge axis directly on the MXU (no dst_oh_t input).
        x = lax.dot_general(dst_oh, msg, (((0,), (0,)), ((), ())),
                            preferred_element_type=jnp.float32)          # (Np, Fp)

    out_ref[...] = x.astype(out_ref.dtype)                       # lane-dense store


def _stack_forward(features, params, src_idx, dst_idx):
    """Pad/stack params, run the fused 3-layer kernel once, slice back."""
    N, Fin0 = features.shape
    E = src_idx.shape[0]
    L = len(params)
    dims = [Fin0] + [int(W.shape[1]) for (W, _, _, _) in params]
    Fp = _round_up(max(dims), 128)      # common lane-padded feature dim
    Np = _round_up(N, 8)
    Ep = _round_up(E, 8)
    f32 = jnp.float32

    feat_p = jnp.zeros((Np, Fp), f32).at[:N, :Fin0].set(features.astype(f32))

    w_stack = jnp.zeros((L, Fp, Fp), f32)
    p_stack = jnp.zeros((L, 8, Fp), f32)    # row0=bias, row1=aw_src, row2=aw_dst
    ab_arr = jnp.zeros((L,), f32)
    for l, (W, b, aw, ab) in enumerate(params):
        fin, fout = W.shape
        w_stack = w_stack.at[l, :fin, :fout].set(W.astype(f32))
        p_stack = p_stack.at[l, 0, :fout].set(b.astype(f32))
        awf = aw.reshape(2 * fout).astype(f32)
        p_stack = p_stack.at[l, 1, :fout].set(awf[:fout])
        p_stack = p_stack.at[l, 2, :fout].set(awf[fout:])
        ab_arr = ab_arr.at[l].set(jnp.asarray(ab, f32).reshape(()))

    # Edge indices (padded rows = -1 so their one-hot rows are all-zero).
    src_col = jnp.full((Ep, 1), -1, jnp.int32).at[:E, 0].set(src_idx.astype(jnp.int32))
    dst_col = jnp.full((Ep, 1), -1, jnp.int32).at[:E, 0].set(dst_idx.astype(jnp.int32))

    flops = L * 2 * (Np * Fp * Fp        # linear
                     + Np * Fp * 2       # per-node scores
                     + 4 * Ep * Np       # edge score gathers
                     + Ep * Np * Fp      # src gather
                     + Ep * Np * Fp      # aggregation
                     + 4 * Ep * Np)      # softmax reductions
    bytes_accessed = 4 * (Np * Fp + L * (Fp * Fp + 8 * Fp + 1)
                          + 2 * Ep + Np * Fp)

    vmem = pl.BlockSpec(memory_space=pltpu.MemorySpace.VMEM)
    smem = pl.BlockSpec(memory_space=pltpu.MemorySpace.SMEM)

    out_p = pl.pallas_call(
        _panda_stack_kernel,
        out_shape=jax.ShapeDtypeStruct((Np, Fp), f32),
        in_specs=[vmem, vmem, vmem, vmem, vmem, smem],
        out_specs=vmem,
        cost_estimate=pl.CostEstimate(
            flops=int(flops), transcendentals=int(L * (Ep + Np)),
            bytes_accessed=int(bytes_accessed)),
    )(feat_p, w_stack, p_stack, src_col, dst_col, ab_arr)

    n_out = dims[-1]
    return out_p[:N, :n_out]


# jit the whole wrapper: preprocessing + single fused kernel launch + slice.
panda_global_attention_stack = jax.jit(_stack_forward)


def global_attention_ref(features, W, b, attn_w, attn_b, src_idx, dst_idx):
    """Pure-JAX reference of one GlobalAttentionLayer (correctness check)."""
    N = features.shape[0]
    Fout = W.shape[1]
    t = features @ W + b.reshape(1, Fout)
    sf = t[src_idx]
    df = t[dst_idx]
    s = (jnp.concatenate([sf, df], axis=-1) @ attn_w.reshape(2 * Fout, 1))[:, 0]
    s = s + attn_b
    s = jnp.where(s > 0, s, 0.2 * s)
    m = jnp.full((N,), -jnp.inf, jnp.float32).at[dst_idx].max(s)
    ex = jnp.exp(s - m[dst_idx])
    den = jnp.zeros((N,), jnp.float32).at[dst_idx].add(ex)
    a = ex / den[dst_idx]
    return jnp.zeros((N, Fout), jnp.float32).at[dst_idx].add(a[:, None] * sf)


if __name__ == "__main__":
    # Small shapes consistent with PANDA's forward:
    #   global_att1: out_features -> hidden*heads
    #   global_att2: hidden*heads -> hidden*heads
    #   global_att3: hidden*heads -> out_features
    N = 12               # nodes
    out_features = 16
    hidden_times_heads = 32

    key = jax.random.PRNGKey(0)
    kf, k1, k2, k3 = jax.random.split(key, 4)

    # Deterministic small graph: self-loop + two ring neighbours per node.
    src_list, dst_list = [], []
    for i in range(N):
        for d in (0, 1, 2):
            src_list.append((i + d) % N)
            dst_list.append(i)
    src_idx = jnp.asarray(src_list, jnp.int32)   # (36,)
    dst_idx = jnp.asarray(dst_list, jnp.int32)   # (36,)

    # Node features `h` standing in for the upstream MPNN/GAT stack output.
    h = jax.random.normal(kf, (N, out_features), jnp.float32)

    def init_layer(k, fin, fout):
        kw, ka = jax.random.split(k)
        lim_w = (6.0 / (fin + fout)) ** 0.5          # xavier_uniform for W
        W = jax.random.uniform(kw, (fin, fout), jnp.float32, -lim_w, lim_w)
        b = jnp.zeros((fout,), jnp.float32)
        lim_a = (6.0 / (2 * fout + 1)) ** 0.5        # xavier_uniform for attn_w
        attn_w = jax.random.uniform(ka, (2 * fout, 1), jnp.float32, -lim_a, lim_a)
        attn_b = jnp.zeros((), jnp.float32)          # zeros_ per reset_parameters
        return W, b, attn_w, attn_b

    params = [
        init_layer(k1, out_features, hidden_times_heads),
        init_layer(k2, hidden_times_heads, hidden_times_heads),
        init_layer(k3, hidden_times_heads, out_features),
    ]

    # Fused Pallas kernel: all 3 layers in one pallas_call, jitted wrapper.
    x_pal = panda_global_attention_stack(h, params, src_idx, dst_idx)

    # Pure-JAX reference, layer by layer.
    x_ref = h
    for (W, b, aw, ab) in params:
        x_ref = global_attention_ref(x_ref, W, b, aw, ab, src_idx, dst_idx)

    jax.block_until_ready(x_pal)
    assert x_pal.shape == (N, out_features)
    err = float(jnp.max(jnp.abs(x_pal - x_ref)))
    assert jnp.allclose(x_pal, x_ref, atol=1e-4, rtol=1e-4), err

    print("KERNEL_OK")
</pallas_src>

<mosaic_0001>
module attributes {stable_mosaic.version = 11 : i64} {
  func.func @_panda_stack_kernel(%arg0: memref<16x128xf32, #tpu.memory_space<vmem>>, %arg1: memref<3x128x128xf32, #tpu.memory_space<vmem>>, %arg2: memref<3x8x128xf32, #tpu.memory_space<vmem>>, %arg3: memref<40x1xi32, #tpu.memory_space<vmem>>, %arg4: memref<40x1xi32, #tpu.memory_space<vmem>>, %arg5: memref<3xf32, #tpu.memory_space<smem>>, %arg6: memref<16x128xf32, #tpu.memory_space<vmem>>) attributes {dimension_semantics = [], scalar_prefetch = 0 : i64, scratch_operands = 0 : i64, tpu.core_type = #tpu.core_type<tc>} {
    %0 = tpu.iota {dimensions = array<i32: 1>} : vector<40x16xi32>
    %c0 = arith.constant 0 : index
    %c0_0 = arith.constant 0 : index
    %1 = vector.load %arg3[%c0, %c0_0] : memref<40x1xi32, #tpu.memory_space<vmem>>, vector<40x1xi32>
    %c0_1 = arith.constant 0 : index
    %c0_2 = arith.constant 0 : index
    %2 = vector.load %arg4[%c0_1, %c0_2] : memref<40x1xi32, #tpu.memory_space<vmem>>, vector<40x1xi32>
    %3 = vector.broadcast %1 : vector<40x1xi32> to vector<40x16xi32>
    %4 = arith.cmpi eq, %0, %3 : vector<40x16xi32>
    %5 = arith.extui %4 : vector<40x16xi1> to vector<40x16xi32>
    %6 = arith.sitofp %5 : vector<40x16xi32> to vector<40x16xf32>
    %7 = vector.broadcast %2 : vector<40x1xi32> to vector<40x16xi32>
    %8 = arith.cmpi eq, %0, %7 : vector<40x16xi32>
    %9 = arith.extui %8 : vector<40x16xi1> to vector<40x16xi32>
    %10 = arith.sitofp %9 : vector<40x16xi32> to vector<40x16xf32>
    %c0_i32 = arith.constant 0 : i32
    %11 = vector.broadcast %c0_i32 : i32 to vector<40x1xi32>
    %12 = arith.cmpi sge, %2, %11 : vector<40x1xi32>
    %c0_3 = arith.constant 0 : index
    %c0_4 = arith.constant 0 : index
    %13 = vector.load %arg0[%c0_3, %c0_4] : memref<16x128xf32, #tpu.memory_space<vmem>>, vector<16x128xf32>
    %c0_5 = arith.constant 0 : index
    %c0_6 = arith.constant 0 : index
    %c0_7 = arith.constant 0 : index
    %14 = vector.load %arg1[%c0_5, %c0_6, %c0_7] : memref<3x128x128xf32, #tpu.memory_space<vmem>>, vector<1x128x128xf32>
    %15 = vector.shape_cast %14 : vector<1x128x128xf32> to vector<128x128xf32>
    %c0_8 = arith.constant 0 : index
    %c0_9 = arith.constant 0 : index
    %c0_10 = arith.constant 0 : index
    %16 = vector.load %arg2[%c0_8, %c0_9, %c0_10] : memref<3x8x128xf32, #tpu.memory_space<vmem>>, vector<1x1x128xf32>
    %17 = vector.shape_cast %16 : vector<1x1x128xf32> to vector<1x128xf32>
    %c0_11 = arith.constant 0 : index
    %c1 = arith.constant 1 : index
    %c0_12 = arith.constant 0 : index
    %18 = vector.load %arg2[%c0_11, %c1, %c0_12] : memref<3x8x128xf32, #tpu.memory_space<vmem>>, vector<1x2x128xf32>
    %19 = vector.shape_cast %18 : vector<1x2x128xf32> to vector<2x128xf32>
    %c0_13 = arith.constant 0 : index
    %20 = memref.load %arg5[%c0_13] : memref<3xf32, #tpu.memory_space<smem>>
    %cst = arith.constant dense<0.000000e+00> : vector<16x128xf32>
    %21 = tpu.matmul %13, %15, %cst {dimension_numbers = #tpu.dot_dimension_numbers<[1], [0], [0], [1], [0, 0, 1, 1], [], []>} : vector<16x128xf32>, vector<128x128xf32>, vector<16x128xf32> -> vector<16x128xf32>
    %22 = vector.broadcast %17 : vector<1x128xf32> to vector<16x128xf32>
    %23 = arith.addf %21, %22 : vector<16x128xf32>
    %cst_14 = arith.constant dense<0.000000e+00> : vector<16x2xf32>
    %24 = tpu.matmul %23, %19, %cst_14 {dimension_numbers = #tpu.dot_dimension_numbers<[1], [1], [0], [0], [0, 0, 1, 0], [], []>} : vector<16x128xf32>, vector<2x128xf32>, vector<16x2xf32> -> vector<16x2xf32>
    %25 = vector.extract_strided_slice %24 {offsets = [0, 0], sizes = [16, 1], strides = [1, 1]} : vector<16x2xf32> to vector<16x1xf32>
    %cst_15 = arith.constant dense<0.000000e+00> : vector<40x1xf32>
    %26 = tpu.matmul %6, %25, %cst_15 {dimension_numbers = #tpu.dot_dimension_numbers<[1], [0], [0], [1], [0, 0, 1, 1], [], []>} : vector<40x16xf32>, vector<16x1xf32>, vector<40x1xf32> -> vector<40x1xf32>
    %27 = vector.extract_strided_slice %24 {offsets = [0, 1], sizes = [16, 1], strides = [1, 1]} : vector<16x2xf32> to vector<16x1xf32>
    %cst_16 = arith.constant dense<0.000000e+00> : vector<40x1xf32>
    %28 = tpu.matmul %10, %27, %cst_16 {dimension_numbers = #tpu.dot_dimension_numbers<[1], [0], [0], [1], [0, 0, 1, 1], [], []>} : vector<40x16xf32>, vector<16x1xf32>, vector<40x1xf32> -> vector<40x1xf32>
    %29 = arith.addf %26, %28 : vector<40x1xf32>
    %30 = vector.broadcast %20 : f32 to vector<40x1xf32>
    %31 = arith.addf %29, %30 : vector<40x1xf32>
    %cst_17 = arith.constant 0.000000e+00 : f32
    %32 = vector.broadcast %cst_17 : f32 to vector<40x1xf32>
    %33 = arith.cmpf ogt, %31, %32 : vector<40x1xf32>
    %cst_18 = arith.constant 2.000000e-01 : f32
    %34 = vector.broadcast %cst_18 : f32 to vector<40x1xf32>
    %35 = arith.mulf %34, %31 : vector<40x1xf32>
    %36 = arith.select %33, %31, %35 : vector<40x1xi1>, vector<40x1xf32>
    %cst_19 = arith.constant -1.000000e+30 : f32
    %37 = vector.broadcast %cst_19 : f32 to vector<40x1xf32>
    %38 = arith.select %12, %36, %37 : vector<40x1xi1>, vector<40x1xf32>
    %cst_20 = arith.constant 0.000000e+00 : f32
    %39 = vector.broadcast %cst_20 : f32 to vector<40x16xf32>
    %40 = arith.cmpf ogt, %10, %39 : vector<40x16xf32>
    %cst_21 = arith.constant -1.000000e+30 : f32
    %41 = vector.shape_cast %38 : vector<40x1xf32> to vector<40x1xf32>
    %42 = vector.broadcast %41 : vector<40x1xf32> to vector<40x16xf32>
    %43 = vector.broadcast %cst_21 : f32 to vector<40x16xf32>
    %44 = arith.select %40, %42, %43 : vector<40x16xi1>, vector<40x16xf32>
    %cst_22 = arith.constant dense<0xFF800000> : vector<16xf32>
    %45 = vector.multi_reduction <maximumf>, %44, %cst_22 [0] : vector<40x16xf32> to vector<16xf32>
    %46 = vector.shape_cast %45 : vector<16xf32> to vector<1x16xf32>
    %47 = vector.broadcast %46 : vector<1x16xf32> to vector<40x16xf32>
    %48 = arith.mulf %10, %47 : vector<40x16xf32>
    %cst_23 = arith.constant dense<0.000000e+00> : vector<40xf32>
    %49 = vector.multi_reduction <add>, %48, %cst_23 [1] : vector<40x16xf32> to vector<40xf32>
    %50 = vector.shape_cast %49 : vector<40xf32> to vector<40x1xf32>
    %51 = arith.subf %38, %50 : vector<40x1xf32>
    %52 = math.exp %51 : vector<40x1xf32>
    %53 = vector.broadcast %52 : vector<40x1xf32> to vector<40x16xf32>
    %54 = arith.mulf %10, %53 : vector<40x16xf32>
    %cst_24 = arith.constant dense<0.000000e+00> : vector<16xf32>
    %55 = vector.multi_reduction <add>, %54, %cst_24 [0] : vector<40x16xf32> to vector<16xf32>
    %56 = vector.shape_cast %55 : vector<16xf32> to vector<1x16xf32>
    %cst_25 = arith.constant 0.000000e+00 : f32
    %57 = vector.broadcast %cst_25 : f32 to vector<1x16xf32>
    %58 = arith.cmpf ogt, %56, %57 : vector<1x16xf32>
    %59 = tpu.reciprocal %56 : vector<1x16xf32> -> vector<1x16xf32>
    %cst_26 = arith.constant 0.000000e+00 : f32
    %60 = vector.broadcast %cst_26 : f32 to vector<1x16xf32>
    %61 = arith.select %58, %59, %60 : vector<1x16xi1>, vector<1x16xf32>
    %62 = vector.broadcast %61 : vector<1x16xf32> to vector<40x16xf32>
    %63 = arith.mulf %10, %62 : vector<40x16xf32>
    %cst_27 = arith.constant dense<0.000000e+00> : vector<40xf32>
    %64 = vector.multi_reduction <add>, %63, %cst_27 [1] : vector<40x16xf32> to vector<40xf32>
    %65 = vector.shape_cast %64 : vector<40xf32> to vector<40x1xf32>
    %66 = arith.mulf %52, %65 : vector<40x1xf32>
    %cst_28 = arith.constant dense<0.000000e+00> : vector<40x128xf32>
    %67 = tpu.matmul %6, %23, %cst_28 {dimension_numbers = #tpu.dot_dimension_numbers<[1], [0], [0], [1], [0, 0, 1, 1], [], []>} : vector<40x16xf32>, vector<16x128xf32>, vector<40x128xf32> -> vector<40x128xf32>
    %68 = vector.broadcast %66 : vector<40x1xf32> to vector<40x128xf32>
    %69 = arith.mulf %68, %67 : vector<40x128xf32>
    %cst_29 = arith.constant dense<0.000000e+00> : vector<16x128xf32>
    %70 = tpu.matmul %10, %69, %cst_29 {dimension_numbers = #tpu.dot_dimension_numbers<[0], [0], [1], [1], [0, 1, 1, 1], [], []>} : vector<40x16xf32>, vector<40x128xf32>, vector<16x128xf32> -> vector<16x128xf32>
    %c1_30 = arith.constant 1 : index
    %c0_31 = arith.constant 0 : index
    %c0_32 = arith.constant 0 : index
    %71 = vector.load %arg1[%c1_30, %c0_31, %c0_32] : memref<3x128x128xf32, #tpu.memory_space<vmem>>, vector<1x128x128xf32>
    %72 = vector.shape_cast %71 : vector<1x128x128xf32> to vector<128x128xf32>
    %c1_33 = arith.constant 1 : index
    %c0_34 = arith.constant 0 : index
    %c0_35 = arith.constant 0 : index
    %73 = vector.load %arg2[%c1_33, %c0_34, %c0_35] : memref<3x8x128xf32, #tpu.memory_space<vmem>>, vector<1x1x128xf32>
    %74 = vector.shape_cast %73 : vector<1x1x128xf32> to vector<1x128xf32>
    %c1_36 = arith.constant 1 : index
    %c1_37 = arith.constant 1 : index
    %c0_38 = arith.constant 0 : index
    %75 = vector.load %arg2[%c1_36, %c1_37, %c0_38] : memref<3x8x128xf32, #tpu.memory_space<vmem>>, vector<1x2x128xf32>
    %76 = vector.shape_cast %75 : vector<1x2x128xf32> to vector<2x128xf32>
    %c1_39 = arith.constant 1 : index
    %77 = memref.load %arg5[%c1_39] : memref<3xf32, #tpu.memory_space<smem>>
    %cst_40 = arith.constant dense<0.000000e+00> : vector<16x128xf32>
    %78 = tpu.matmul %70, %72, %cst_40 {dimension_numbers = #tpu.dot_dimension_numbers<[1], [0], [0], [1], [0, 0, 1, 1], [], []>} : vector<16x128xf32>, vector<128x128xf32>, vector<16x128xf32> -> vector<16x128xf32>
    %79 = vector.broadcast %74 : vector<1x128xf32> to vector<16x128xf32>
    %80 = arith.addf %78, %79 : vector<16x128xf32>
    %cst_41 = arith.constant dense<0.000000e+00> : vector<16x2xf32>
    %81 = tpu.matmul %80, %76, %cst_41 {dimension_numbers = #tpu.dot_dimension_numbers<[1], [1], [0], [0], [0, 0, 1, 0], [], []>} : vector<16x128xf32>, vector<2x128xf32>, vector<16x2xf32> -> vector<16x2xf32>
    %82 = vector.extract_strided_slice %81 {offsets = [0, 0], sizes = [16, 1], strides = [1, 1]} : vector<16x2xf32> to vector<16x1xf32>
    %cst_42 = arith.constant dense<0.000000e+00> : vector<40x1xf32>
    %83 = tpu.matmul %6, %82, %cst_42 {dimension_numbers = #tpu.dot_dimension_numbers<[1], [0], [0], [1], [0, 0, 1, 1], [], []>} : vector<40x16xf32>, vector<16x1xf32>, vector<40x1xf32> -> vector<40x1xf32>
    %84 = vector.extract_strided_slice %81 {offsets = [0, 1], sizes = [16, 1], strides = [1, 1]} : vector<16x2xf32> to vector<16x1xf32>
    %cst_43 = arith.constant dense<0.000000e+00> : vector<40x1xf32>
    %85 = tpu.matmul %10, %84, %cst_43 {dimension_numbers = #tpu.dot_dimension_numbers<[1], [0], [0], [1], [0, 0, 1, 1], [], []>} : vector<40x16xf32>, vector<16x1xf32>, vector<40x1xf32> -> vector<40x1xf32>
    %86 = arith.addf %83, %85 : vector<40x1xf32>
    %87 = vector.broadcast %77 : f32 to vector<40x1xf32>
    %88 = arith.addf %86, %87 : vector<40x1xf32>
    %cst_44 = arith.constant 0.000000e+00 : f32
    %89 = vector.broadcast %cst_44 : f32 to vector<40x1xf32>
    %90 = arith.cmpf ogt, %88, %89 : vector<40x1xf32>
    %cst_45 = arith.constant 2.000000e-01 : f32
    %91 = vector.broadcast %cst_45 : f32 to vector<40x1xf32>
    %92 = arith.mulf %91, %88 : vector<40x1xf32>
    %93 = arith.select %90, %88, %92 : vector<40x1xi1>, vector<40x1xf32>
    %cst_46 = arith.constant -1.000000e+30 : f32
    %94 = vector.broadcast %cst_46 : f32 to vector<40x1xf32>
    %95 = arith.select %12, %93, %94 : vector<40x1xi1>, vector<40x1xf32>
    %cst_47 = arith.constant 0.000000e+00 : f32
    %96 = vector.broadcast %cst_47 : f32 to vector<40x16xf32>
    %97 = arith.cmpf ogt, %10, %96 : vector<40x16xf32>
    %cst_48 = arith.constant -1.000000e+30 : f32
    %98 = vector.shape_cast %95 : vector<40x1xf32> to vector<40x1xf32>
    %99 = vector.broadcast %98 : vector<40x1xf32> to vector<40x16xf32>
    %100 = vector.broadcast %cst_48 : f32 to vector<40x16xf32>
    %101 = arith.select %97, %99, %100 : vector<40x16xi1>, vector<40x16xf32>
    %cst_49 = arith.constant dense<0xFF800000> : vector<16xf32>
    %102 = vector.multi_reduction <maximumf>, %101, %cst_49 [0] : vector<40x16xf32> to vector<16xf32>
    %103 = vector.shape_cast %102 : vector<16xf32> to vector<1x16xf32>
    %104 = vector.broadcast %103 : vector<1x16xf32> to vector<40x16xf32>
    %105 = arith.mulf %10, %104 : vector<40x16xf32>
    %cst_50 = arith.constant dense<0.000000e+00> : vector<40xf32>
    %106 = vector.multi_reduction <add>, %105, %cst_50 [1] : vector<40x16xf32> to vector<40xf32>
    %107 = vector.shape_cast %106 : vector<40xf32> to vector<40x1xf32>
    %108 = arith.subf %95, %107 : vector<40x1xf32>
    %109 = math.exp %108 : vector<40x1xf32>
    %110 = vector.broadcast %109 : vector<40x1xf32> to vector<40x16xf32>
    %111 = arith.mulf %10, %110 : vector<40x16xf32>
    %cst_51 = arith.constant dense<0.000000e+00> : vector<16xf32>
    %112 = vector.multi_reduction <add>, %111, %cst_51 [0] : vector<40x16xf32> to vector<16xf32>
    %113 = vector.shape_cast %112 : vector<16xf32> to vector<1x16xf32>
    %cst_52 = arith.constant 0.000000e+00 : f32
    %114 = vector.broadcast %cst_52 : f32 to vector<1x16xf32>
    %115 = arith.cmpf ogt, %113, %114 : vector<1x16xf32>
    %116 = tpu.reciprocal %113 : vector<1x16xf32> -> vector<1x16xf32>
    %cst_53 = arith.constant 0.000000e+00 : f32
    %117 = vector.broadcast %cst_53 : f32 to vector<1x16xf32>
    %118 = arith.select %115, %116, %117 : vector<1x16xi1>, vector<1x16xf32>
    %119 = vector.broadcast %118 : vector<1x16xf32> to vector<40x16xf32>
    %120 = arith.mulf %10, %119 : vector<40x16xf32>
    %cst_54 = arith.constant dense<0.000000e+00> : vector<40xf32>
    %121 = vector.multi_reduction <add>, %120, %cst_54 [1] : vector<40x16xf32> to vector<40xf32>
    %122 = vector.shape_cast %121 : vector<40xf32> to vector<40x1xf32>
    %123 = arith.mulf %109, %122 : vector<40x1xf32>
    %cst_55 = arith.constant dense<0.000000e+00> : vector<40x128xf32>
    %124 = tpu.matmul %6, %80, %cst_55 {dimension_numbers = #tpu.dot_dimension_numbers<[1], [0], [0], [1], [0, 0, 1, 1], [], []>} : vector<40x16xf32>, vector<16x128xf32>, vector<40x128xf32> -> vector<40x128xf32>
    %125 = vector.broadcast %123 : vector<40x1xf32> to vector<40x128xf32>
    %126 = arith.mulf %125, %124 : vector<40x128xf32>
    %cst_56 = arith.constant dense<0.000000e+00> : vector<16x128xf32>
    %127 = tpu.matmul %10, %126, %cst_56 {dimension_numbers = #tpu.dot_dimension_numbers<[0], [0], [1], [1], [0, 1, 1, 1], [], []>} : vector<40x16xf32>, vector<40x128xf32>, vector<16x128xf32> -> vector<16x128xf32>
    %c2 = arith.constant 2 : index
    %c0_57 = arith.constant 0 : index
    %c0_58 = arith.constant 0 : index
    %128 = vector.load %arg1[%c2, %c0_57, %c0_58] : memref<3x128x128xf32, #tpu.memory_space<vmem>>, vector<1x128x128xf32>
    %129 = vector.shape_cast %128 : vector<1x128x128xf32> to vector<128x128xf32>
    %c2_59 = arith.constant 2 : index
    %c0_60 = arith.constant 0 : index
    %c0_61 = arith.constant 0 : index
    %130 = vector.load %arg2[%c2_59, %c0_60, %c0_61] : memref<3x8x128xf32, #tpu.memory_space<vmem>>, vector<1x1x128xf32>
    %131 = vector.shape_cast %130 : vector<1x1x128xf32> to vector<1x128xf32>
    %c2_62 = arith.constant 2 : index
    %c1_63 = arith.constant 1 : index
    %c0_64 = arith.constant 0 : index
    %132 = vector.load %arg2[%c2_62, %c1_63, %c0_64] : memref<3x8x128xf32, #tpu.memory_space<vmem>>, vector<1x2x128xf32>
    %133 = vector.shape_cast %132 : vector<1x2x128xf32> to vector<2x128xf32>
    %c2_65 = arith.constant 2 : index
    %134 = memref.load %arg5[%c2_65] : memref<3xf32, #tpu.memory_space<smem>>
    %cst_66 = arith.constant dense<0.000000e+00> : vector<16x128xf32>
    %135 = tpu.matmul %127, %129, %cst_66 {dimension_numbers = #tpu.dot_dimension_numbers<[1], [0], [0], [1], [0, 0, 1, 1], [], []>} : vector<16x128xf32>, vector<128x128xf32>, vector<16x128xf32> -> vector<16x128xf32>
    %136 = vector.broadcast %131 : vector<1x128xf32> to vector<16x128xf32>
    %137 = arith.addf %135, %136 : vector<16x128xf32>
    %cst_67 = arith.constant dense<0.000000e+00> : vector<16x2xf32>
    %138 = tpu.matmul %137, %133, %cst_67 {dimension_numbers = #tpu.dot_dimension_numbers<[1], [1], [0], [0], [0, 0, 1, 0], [], []>} : vector<16x128xf32>, vector<2x128xf32>, vector<16x2xf32> -> vector<16x2xf32>
    %139 = vector.extract_strided_slice %138 {offsets = [0, 0], sizes = [16, 1], strides = [1, 1]} : vector<16x2xf32> to vector<16x1xf32>
    %cst_68 = arith.constant dense<0.000000e+00> : vector<40x1xf32>
    %140 = tpu.matmul %6, %139, %cst_68 {dimension_numbers = #tpu.dot_dimension_numbers<[1], [0], [0], [1], [0, 0, 1, 1], [], []>} : vector<40x16xf32>, vector<16x1xf32>, vector<40x1xf32> -> vector<40x1xf32>
    %141 = vector.extract_strided_slice %138 {offsets = [0, 1], sizes = [16, 1], strides = [1, 1]} : vector<16x2xf32> to vector<16x1xf32>
    %cst_69 = arith.constant dense<0.000000e+00> : vector<40x1xf32>
    %142 = tpu.matmul %10, %141, %cst_69 {dimension_numbers = #tpu.dot_dimension_numbers<[1], [0], [0], [1], [0, 0, 1, 1], [], []>} : vector<40x16xf32>, vector<16x1xf32>, vector<40x1xf32> -> vector<40x1xf32>
    %143 = arith.addf %140, %142 : vector<40x1xf32>
    %144 = vector.broadcast %134 : f32 to vector<40x1xf32>
    %145 = arith.addf %143, %144 : vector<40x1xf32>
    %cst_70 = arith.constant 0.000000e+00 : f32
    %146 = vector.broadcast %cst_70 : f32 to vector<40x1xf32>
    %147 = arith.cmpf ogt, %145, %146 : vector<40x1xf32>
    %cst_71 = arith.constant 2.000000e-01 : f32
    %148 = vector.broadcast %cst_71 : f32 to vector<40x1xf32>
    %149 = arith.mulf %148, %145 : vector<40x1xf32>
    %150 = arith.select %147, %145, %149 : vector<40x1xi1>, vector<40x1xf32>
    %cst_72 = arith.constant -1.000000e+30 : f32
    %151 = vector.broadcast %cst_72 : f32 to vector<40x1xf32>
    %152 = arith.select %12, %150, %151 : vector<40x1xi1>, vector<40x1xf32>
    %cst_73 = arith.constant 0.000000e+00 : f32
    %153 = vector.broadcast %cst_73 : f32 to vector<40x16xf32>
    %154 = arith.cmpf ogt, %10, %153 : vector<40x16xf32>
    %cst_74 = arith.constant -1.000000e+30 : f32
    %155 = vector.shape_cast %152 : vector<40x1xf32> to vector<40x1xf32>
    %156 = vector.broadcast %155 : vector<40x1xf32> to vector<40x16xf32>
    %157 = vector.broadcast %cst_74 : f32 to vector<40x16xf32>
    %158 = arith.select %154, %156, %157 : vector<40x16xi1>, vector<40x16xf32>
    %cst_75 = arith.constant dense<0xFF800000> : vector<16xf32>
    %159 = vector.multi_reduction <maximumf>, %158, %cst_75 [0] : vector<40x16xf32> to vector<16xf32>
    %160 = vector.shape_cast %159 : vector<16xf32> to vector<1x16xf32>
    %161 = vector.broadcast %160 : vector<1x16xf32> to vector<40x16xf32>
    %162 = arith.mulf %10, %161 : vector<40x16xf32>
    %cst_76 = arith.constant dense<0.000000e+00> : vector<40xf32>
    %163 = vector.multi_reduction <add>, %162, %cst_76 [1] : vector<40x16xf32> to vector<40xf32>
    %164 = vector.shape_cast %163 : vector<40xf32> to vector<40x1xf32>
    %165 = arith.subf %152, %164 : vector<40x1xf32>
    %166 = math.exp %165 : vector<40x1xf32>
    %167 = vector.broadcast %166 : vector<40x1xf32> to vector<40x16xf32>
    %168 = arith.mulf %10, %167 : vector<40x16xf32>
    %cst_77 = arith.constant dense<0.000000e+00> : vector<16xf32>
    %169 = vector.multi_reduction <add>, %168, %cst_77 [0] : vector<40x16xf32> to vector<16xf32>
    %170 = vector.shape_cast %169 : vector<16xf32> to vector<1x16xf32>
    %cst_78 = arith.constant 0.000000e+00 : f32
    %171 = vector.broadcast %cst_78 : f32 to vector<1x16xf32>
    %172 = arith.cmpf ogt, %170, %171 : vector<1x16xf32>
    %173 = tpu.reciprocal %170 : vector<1x16xf32> -> vector<1x16xf32>
    %cst_79 = arith.constant 0.000000e+00 : f32
    %174 = vector.broadcast %cst_79 : f32 to vector<1x16xf32>
    %175 = arith.select %172, %173, %174 : vector<1x16xi1>, vector<1x16xf32>
    %176 = vector.broadcast %175 : vector<1x16xf32> to vector<40x16xf32>
    %177 = arith.mulf %10, %176 : vector<40x16xf32>
    %cst_80 = arith.constant dense<0.000000e+00> : vector<40xf32>
    %178 = vector.multi_reduction <add>, %177, %cst_80 [1] : vector<40x16xf32> to vector<40xf32>
    %179 = vector.shape_cast %178 : vector<40xf32> to vector<40x1xf32>
    %180 = arith.mulf %166, %179 : vector<40x1xf32>
    %cst_81 = arith.constant dense<0.000000e+00> : vector<40x128xf32>
    %181 = tpu.matmul %6, %137, %cst_81 {dimension_numbers = #tpu.dot_dimension_numbers<[1], [0], [0], [1], [0, 0, 1, 1], [], []>} : vector<40x16xf32>, vector<16x128xf32>, vector<40x128xf32> -> vector<40x128xf32>
    %182 = vector.broadcast %180 : vector<40x1xf32> to vector<40x128xf32>
    %183 = arith.mulf %182, %181 : vector<40x128xf32>
    %cst_82 = arith.constant dense<0.000000e+00> : vector<16x128xf32>
    %184 = tpu.matmul %10, %183, %cst_82 {dimension_numbers = #tpu.dot_dimension_numbers<[0], [0], [1], [1], [0, 1, 1, 1], [], []>} : vector<40x16xf32>, vector<40x128xf32>, vector<16x128xf32> -> vector<16x128xf32>
    %c0_83 = arith.constant 0 : index
    %c0_84 = arith.constant 0 : index
    %185 = vector.load %arg6[%c0_83, %c0_84] : memref<16x128xf32, #tpu.memory_space<vmem>>, vector<16x128xf32>
    tpu.vector_store %arg6[%c0_83, %c0_84], %184 {strides = array<i32>} : memref<16x128xf32, #tpu.memory_space<vmem>>, vector<16x128xf32>,
    return
  }
}

</mosaic_0001>

<llo_original>
// kernel: _stack_forward.1
$region0: #{_stack_forward.1}
  #allocation0 [shape = 'u32[]', space=smem, size = 0x4, offset = 0x4, fixed_abs, tag = 'smem constant byte address 0x4 - core index']
  #allocation1 [shape = 'u32[144,128]{1,0:T(1,128)}', space=vmem, size = 0x12000, scoped, tag = 'internal scratch']
  %s0 = inlined_call_operand.vmem [shape: f32[16,128], index: 0, kind: input, shape index: {}]
  %s1 = inlined_call_operand.vmem [shape: f32[3,128,128], index: 1, kind: input, shape index: {}]
  %s2 = inlined_call_operand.vmem [shape: f32[3,8,128], index: 2, kind: input, shape index: {}]
  %s3 = inlined_call_operand.vmem [shape: s32[40,1], index: 3, kind: input, shape index: {}]
  %s4 = inlined_call_operand.vmem [shape: s32[40,1], index: 4, kind: input, shape index: {}]
  %s5 = inlined_call_operand.vmem [shape: f32[3], index: 5, kind: input, shape index: {}]
  %s6 = inlined_call_operand.hbm [shape: f32[16,128], index: 6, kind: output, shape index: {}]
  %s7 = sld [smem:[#allocation0]]
  $region38: #{_stack_forward.1} parent=0
    _
  %s9 = ssub.s32 1, %s7
  %s10 = scalar_select 0, %s9, %s7
  $region1: #{_stack_forward.1} parent=0
    #allocation2 [shape = 'u8[512]{0}', space=smem, size = 0x200, scoped, tag = 'input window, operand 5, single buffered']
    #allocation3 [shape = 's32[1]{0}', space=sflag, size = 0x4, scoped, tag = 'scoped memory for _stack_forward.1']
    #allocation4 [shape = 's32[1]{0}', space=sflag, size = 0x4, scoped, tag = 'scoped memory for _stack_forward.1']
    #allocation5 [shape = 'u8[8192]{0}', space=vmem, size = 0x2000, scoped, tag = 'output window, operand 0, single buffered']
    %11 = vsyncpa [#allocation4], 0
    %12 = vsyncpa [#allocation3], 0
    // Predicated region
    $region2: #{_stack_forward.1} parent=1 // pred_check
      _
    $region3: #{_stack_forward.1} parent=1 // pred_check_branch
      %14 = sbr.rel (0) target = $region5
    $region4: #{_stack_forward.1} parent=1 // pred_region
      _
    $region5: #{_stack_forward.1} parent=1 // pred_fallthru
      _
    // Predicated region
    $region6: #{_stack_forward.1} parent=1 // pred_check
      _
    $region7: #{_stack_forward.1} parent=1 // pred_check_branch
      %16 = sbr.rel (0) target = $region9
    $region8: #{_stack_forward.1} parent=1 // pred_region
      _
    $region9: #{_stack_forward.1} parent=1 // pred_fallthru
      _
    // Predicated region
    $region10: #{_stack_forward.1} parent=1 // pred_check
      _
    $region11: #{_stack_forward.1} parent=1 // pred_check_branch
      %18 = sbr.rel (0) target = $region13
    $region12: #{_stack_forward.1} parent=1 // pred_region
      _
    $region13: #{_stack_forward.1} parent=1 // pred_fallthru
      _
    // Predicated region
    $region14: #{_stack_forward.1} parent=1 // pred_check
      _
    $region15: #{_stack_forward.1} parent=1 // pred_check_branch
      %20 = sbr.rel (0) target = $region17
    $region16: #{_stack_forward.1} parent=1 // pred_region
      _
    $region17: #{_stack_forward.1} parent=1 // pred_fallthru
      _
    // Predicated region
    $region18: #{_stack_forward.1} parent=1 // pred_check
      _
    $region19: #{_stack_forward.1} parent=1 // pred_check_branch
      %22 = sbr.rel (0) target = $region21
    $region20: #{_stack_forward.1} parent=1 // pred_region
      _
    $region21: #{_stack_forward.1} parent=1 // pred_fallthru
      _
    // Predicated region
    $region22: #{_stack_forward.1} parent=1 // pred_check
      _
    $region23: #{_stack_forward.1} parent=1 // pred_check_branch
      %24 = sbr.rel (0) target = $region25
    $region24: #{_stack_forward.1} parent=1 // pred_region
      %s26 = ssub.s32 16, 16
      %27 = vsyncadd [#allocation4], %s26
      %s29 = sshll.u32 %s5, 4
      %s30 = int_to_ptr.vmem [resolvable:$true] %s29
      %32 = dma.vmem_to_smem %s30, 16, [#allocation2], [#allocation4]
    $region25: #{_stack_forward.1} parent=1 // pred_fallthru
      _
    // Predicated region
    $region26: #{_stack_forward.1} parent=1 // pred_check
      _
    $region27: #{_stack_forward.1} parent=1 // pred_check_branch
      %34 = sbr.rel (0) target = $region29
    $region28: #{_stack_forward.1} parent=1 // pred_region
      %35 = dma.done [#allocation4], 16
    $region29: #{_stack_forward.1} parent=1 // pred_fallthru
      _
    %36 = sfence
    %v37 = vlaneseq
    %v38 = vand.u32 %v37, 127
    %v39 = vld [vmem:[%s3] sm:$0xff]
    %v40 = vld [vmem:[%s3 + $0x8] sm:$0xff]
    %v41 = vld [vmem:[%s3 + $0x10] sm:$0xff]
    %v42 = vld [vmem:[%s3 + $0x18] sm:$0xff]
    %v43 = vld [vmem:[%s3 + $0x20] sm:$0xff]
    %v44 = vld [vmem:[%s4] sm:$0xff]
    %v45 = vld [vmem:[%s4 + $0x8] sm:$0xff]
    %v46 = vld [vmem:[%s4 + $0x10] sm:$0xff]
    %v47 = vld [vmem:[%s4 + $0x18] sm:$0xff]
    %v48 = vld [vmem:[%s4 + $0x20] sm:$0xff]
    %49 = vset.pattern.permute.xlu0 0
    %50 = vperm.xlu0 %49, %v39
    %v51 = vpop.permute.xlu0 %50
    %52 = vset.pattern.permute.xlu0 0
    %53 = vperm.xlu0 %52, %v40
    %v54 = vpop.permute.xlu0 %53
    %55 = vset.pattern.permute.xlu0 0
    %56 = vperm.xlu0 %55, %v41
    %v57 = vpop.permute.xlu0 %56
    %58 = vset.pattern.permute.xlu0 0
    %59 = vperm.xlu0 %58, %v42
    %v60 = vpop.permute.xlu0 %59
    %61 = vset.pattern.permute.xlu0 0
    %62 = vperm.xlu0 %61, %v43
    %v63 = vpop.permute.xlu0 %62
    %vm64 = vcmp.eq.s32.totalorder %v38, %v51
    %vm65 = vcmp.eq.s32.totalorder %v38, %v54
    %vm66 = vcmp.eq.s32.totalorder %v38, %v57
    %vm67 = vcmp.eq.s32.totalorder %v38, %v60
    %vm68 = vcmp.eq.s32.totalorder %v38, %v63
    %v69 = vsel %vm64, 1, 0
    %v70 = vsel %vm65, 1, 0
    %v71 = vsel %vm66, 1, 0
    %v72 = vsel %vm67, 1, 0
    %v73 = vsel %vm68, 1, 0
    %v74 = vcvt.s32.f32 %v69
    %v75 = vcvt.s32.f32 %v70
    %v76 = vcvt.s32.f32 %v71
    %v77 = vcvt.s32.f32 %v72
    %v78 = vcvt.s32.f32 %v73
    %79 = vset.pattern.permute.xlu0 0
    %80 = vperm.xlu0 %79, %v44
    %v81 = vpop.permute.xlu0 %80
    %82 = vset.pattern.permute.xlu0 0
    %83 = vperm.xlu0 %82, %v45
    %v84 = vpop.permute.xlu0 %83
    %85 = vset.pattern.permute.xlu0 0
    %86 = vperm.xlu0 %85, %v46
    %v87 = vpop.permute.xlu0 %86
    %88 = vset.pattern.permute.xlu0 0
    %89 = vperm.xlu0 %88, %v47
    %v90 = vpop.permute.xlu0 %89
    %91 = vset.pattern.permute.xlu0 0
    %92 = vperm.xlu0 %91, %v48
    %v93 = vpop.permute.xlu0 %92
    %vm94 = vcmp.eq.s32.totalorder %v38, %v81
    %vm95 = vcmp.eq.s32.totalorder %v38, %v84
    %vm96 = vcmp.eq.s32.totalorder %v38, %v87
    %vm97 = vcmp.eq.s32.totalorder %v38, %v90
    %vm98 = vcmp.eq.s32.totalorder %v38, %v93
    %v99 = vsel %vm94, 1, 0
    %v100 = vsel %vm95, 1, 0
    %v101 = vsel %vm96, 1, 0
    %v102 = vsel %vm97, 1, 0
    %v103 = vsel %vm98, 1, 0
    %v104 = vcvt.s32.f32 %v99
    %v105 = vcvt.s32.f32 %v100
    %v106 = vcvt.s32.f32 %v101
    %v107 = vcvt.s32.f32 %v102
    %v108 = vcvt.s32.f32 %v103
    %vm109 = vcmp.ge.s32.totalorder %v44, 0
    %vm110 = vcmp.ge.s32.totalorder %v45, 0
    %vm111 = vcmp.ge.s32.totalorder %v46, 0
    %vm112 = vcmp.ge.s32.totalorder %v47, 0
    %vm113 = vcmp.ge.s32.totalorder %v48, 0
    %v114 = vld [vmem:[%s0] sm:$0xff]
    %v115 = vld [vmem:[%s0 + $0x8] sm:$0xff]
    %v116 = vld [vmem:[%s1] sm:$0xff]
    %v117 = vld [vmem:[%s1 + $0x8] sm:$0xff]
    %v118 = vld [vmem:[%s1 + $0x10] sm:$0xff]
    %v119 = vld [vmem:[%s1 + $0x18] sm:$0xff]
    %v120 = vld [vmem:[%s1 + $0x20] sm:$0xff]
    %v121 = vld [vmem:[%s1 + $0x28] sm:$0xff]
    %v122 = vld [vmem:[%s1 + $0x30] sm:$0xff]
    %v123 = vld [vmem:[%s1 + $0x38] sm:$0xff]
    %v124 = vld [vmem:[%s1 + $0x40] sm:$0xff]
    %v125 = vld [vmem:[%s1 + $0x48] sm:$0xff]
    %v126 = vld [vmem:[%s1 + $0x50] sm:$0xff]
    %v127 = vld [vmem:[%s1 + $0x58] sm:$0xff]
    %v128 = vld [vmem:[%s1 + $0x60] sm:$0xff]
    %v129 = vld [vmem:[%s1 + $0x68] sm:$0xff]
    %v130 = vld [vmem:[%s1 + $0x70] sm:$0xff]
    %v131 = vld [vmem:[%s1 + $0x78] sm:$0xff]
    %v132 = vld [vmem:[%s2] sm:$0x1]
    %v133 = vld [vmem:[%s2 + $0x1] sm:$0x3]
    %s134 = sld [smem:[#allocation2]]
    %v135 = vlaneseq
    %v136 = vshrl.u32 %v135, 7
    %v137 = vsub.s32 0, %v136
    %v138 = vrot.slane %v132, %v137
    %139 = vmatprep.subr.mxu0 0.0
    %140 = vmatpush1.msra.mxu0 %v116
    %141 = vmatprep.subr.mxu0 0.0
    %142 = vmatpush1.msra.mxu0 %v117
    %143 = vmatprep.subr.mxu0 0.0
    %144 = vmatpush1.msra.mxu0 %v118
    %145 = vmatprep.subr.mxu0 0.0
    %146 = vmatpush1.msra.mxu0 %v119
    %147 = vmatprep.subr.mxu0 0.0
    %148 = vmatpush1.msra.mxu0 %v120
    %149 = vmatprep.subr.mxu0 0.0
    %150 = vmatpush1.msra.mxu0 %v121
    %151 = vmatprep.subr.mxu0 0.0
    %152 = vmatpush1.msra.mxu0 %v122
    %153 = vmatprep.subr.mxu0 0.0
    %154 = vmatpush1.msra.mxu0 %v123
    %155 = vmatprep.subr.mxu0 0.0
    %156 = vmatpush1.msra.mxu0 %v124
    %157 = vmatprep.subr.mxu0 0.0
    %158 = vmatpush1.msra.mxu0 %v125
    %159 = vmatprep.subr.mxu0 0.0
    %160 = vmatpush1.msra.mxu0 %v126
    %161 = vmatprep.subr.mxu0 0.0
    %162 = vmatpush1.msra.mxu0 %v127
    %163 = vmatprep.subr.mxu0 0.0
    %164 = vmatpush1.msra.mxu0 %v128
    %165 = vmatprep.subr.mxu0 0.0
    %166 = vmatpush1.msra.mxu0 %v129
    %167 = vmatprep.subr.mxu0 0.0
    %168 = vmatpush1.msra.mxu0 %v130
    %169 = vmatprep.subr.mxu0 0.0
    %170 = vmatpush1.msra.mxu0 %v131
    %171 = vmatprep.subr.mxu0 0.0
    %172 = vmatpush1.msra.mxu0 0.0
    %173 = vmatprep.subr.mxu0 0.0
    %174 = vmatpush1.msra.mxu0 0.0
    %175 = vmatprep.subr.mxu0 0.0
    %176 = vmatpush1.msra.mxu0 0.0
    %177 = vmatprep.subr.mxu0 0.0
    %178 = vmatpush1.msra.mxu0 0.0
    %179 = vmatprep.subr.mxu0 0.0
    %180 = vmatpush1.msra.mxu0 0.0
    %181 = vmatprep.subr.mxu0 0.0
    %182 = vmatpush1.msra.mxu0 0.0
    %183 = vmatprep.subr.mxu0 0.0
    %184 = vmatpush1.msra.mxu0 0.0
    %185 = vmatprep.subr.mxu0 0.0
    %186 = vmatpush1.msra.mxu0 0.0
    %187 = vmatprep.subr.mxu0 0.0
    %188 = vmatpush1.msra.mxu0 0.0
    %189 = vmatprep.subr.mxu0 0.0
    %190 = vmatpush1.msra.mxu0 0.0
    %191 = vmatprep.subr.mxu0 0.0
    %192 = vmatpush1.msra.mxu0 0.0
    %193 = vmatprep.subr.mxu0 0.0
    %194 = vmatpush1.msra.mxu0 0.0
    %195 = vmatprep.subr.mxu0 0.0
    %196 = vmatpush1.msra.mxu0 0.0
    %197 = vmatprep.subr.mxu0 0.0
    %198 = vmatpush1.msra.mxu0 0.0
    %199 = vmatprep.subr.mxu0 0.0
    %200 = vmatpush1.msra.mxu0 0.0
    %201 = vmatprep.subr.mxu0 0.0
    %202 = vmatpush1.msra.mxu0 0.0
    %203 = vmatprep.mubr.f32.mxu0 0.0
    %204 = vmatmul.mubr.f32.gmra.mrb[0].mxu0 %v114
    %v205 = vpop.f32.mrb[0].mxu0
    %v206 = vadd.f32 %v138, %v205
    %v207 = vpop.f32.mrb[0].mxu0
    %208 = vmatprep.mubr.f32.mxu0 0.0
    %209 = vmatmul.mubr.f32.gmra.mrb[0].mxu0 %v115
    %v210 = vpop.f32.mrb[0].mxu0
    %v211 = vadd.f32 %v138, %v210
    %v212 = vpop.f32.mrb[0].mxu0
    %213 = vdwg.mxu0
    %214 = vmatprep.subr.mxu0 0.0
    %215 = vmatpush1.xpose.msra.mxu0 %v133
    %216 = vmatprep.subr.mxu0 0.0
    %217 = vmatpush1.xpose.msra.mxu0 0.0
    %218 = vmatprep.subr.mxu0 0.0
    %219 = vmatpush1.xpose.msra.mxu0 0.0
    %220 = vmatprep.subr.mxu0 0.0
    %221 = vmatpush1.xpose.msra.mxu0 0.0
    %222 = vmatprep.subr.mxu0 0.0
    %223 = vmatpush1.xpose.msra.mxu0 0.0
    %224 = vmatprep.subr.mxu0 0.0
    %225 = vmatpush1.xpose.msra.mxu0 0.0
    %226 = vmatprep.subr.mxu0 0.0
    %227 = vmatpush1.xpose.msra.mxu0 0.0
    %228 = vmatprep.subr.mxu0 0.0
    %229 = vmatpush1.xpose.msra.mxu0 0.0
    %230 = vmatprep.subr.mxu0 0.0
    %231 = vmatpush1.xpose.msra.mxu0 0.0
    %232 = vmatprep.subr.mxu0 0.0
    %233 = vmatpush1.xpose.msra.mxu0 0.0
    %234 = vmatprep.subr.mxu0 0.0
    %235 = vmatpush1.xpose.msra.mxu0 0.0
    %236 = vmatprep.subr.mxu0 0.0
    %237 = vmatpush1.xpose.msra.mxu0 0.0
    %238 = vmatprep.subr.mxu0 0.0
    %239 = vmatpush1.xpose.msra.mxu0 0.0
    %240 = vmatprep.subr.mxu0 0.0
    %241 = vmatpush1.xpose.msra.mxu0 0.0
    %242 = vmatprep.subr.mxu0 0.0
    %243 = vmatpush1.xpose.msra.mxu0 0.0
    %244 = vmatprep.subr.mxu0 0.0
    %245 = vmatpush1.xpose.msra.mxu0 0.0
    %246 = vmatprep.subr.mxu0 0.0
    %247 = vmatpush1.xpose.msra.mxu0 0.0
    %248 = vmatprep.subr.mxu0 0.0
    %249 = vmatpush1.xpose.msra.mxu0 0.0
    %250 = vmatprep.subr.mxu0 0.0
    %251 = vmatpush1.xpose.msra.mxu0 0.0
    %252 = vmatprep.subr.mxu0 0.0
    %253 = vmatpush1.xpose.msra.mxu0 0.0
    %254 = vmatprep.subr.mxu0 0.0
    %255 = vmatpush1.xpose.msra.mxu0 0.0
    %256 = vmatprep.subr.mxu0 0.0
    %257 = vmatpush1.xpose.msra.mxu0 0.0
    %258 = vmatprep.subr.mxu0 0.0
    %259 = vmatpush1.xpose.msra.mxu0 0.0
    %260 = vmatprep.subr.mxu0 0.0
    %261 = vmatpush1.xpose.msra.mxu0 0.0
    %262 = vmatprep.subr.mxu0 0.0
    %263 = vmatpush1.xpose.msra.mxu0 0.0
    %264 = vmatprep.subr.mxu0 0.0
    %265 = vmatpush1.xpose.msra.mxu0 0.0
    %266 = vmatprep.subr.mxu0 0.0
    %267 = vmatpush1.xpose.msra.mxu0 0.0
    %268 = vmatprep.subr.mxu0 0.0
    %269 = vmatpush1.xpose.msra.mxu0 0.0
    %270 = vmatprep.subr.mxu0 0.0
    %271 = vmatpush1.xpose.msra.mxu0 0.0
    %272 = vmatprep.subr.mxu0 0.0
    %273 = vmatpush1.xpose.msra.mxu0 0.0
    %274 = vmatprep.subr.mxu0 0.0
    %275 = vmatpush1.xpose.msra.mxu0 0.0
    %276 = vmatprep.subr.mxu0 0.0
    %277 = vmatpush1.xpose.msra.mxu0 0.0
    %278 = vmatprep.mubr.f32.mxu0 0.0
    %279 = vmatmul.mubr.f32.gmra.mrb[0].mxu0 %v206
    %v280 = vpop.f32.mrb[0].mxu0
    %v281 = vadd.f32 0.0, %v280
    %v282 = vpop.f32.mrb[0].mxu0
    %283 = vmatprep.mubr.f32.mxu0 0.0
    %284 = vmatmul.mubr.f32.gmra.mrb[0].mxu0 %v211
    %v285 = vpop.f32.mrb[0].mxu0
    %v286 = vadd.f32 0.0, %v285
    %v287 = vpop.f32.mrb[0].mxu0
    %288 = vdwg.mxu0
    %291 = vrot.lane.b32.xlu0 %v281, 127
    %v292 = vpop.permute.xlu0 %291
    %293 = vrot.lane.b32.xlu0 %v286, 127
    %v294 = vpop.permute.xlu0 %293
    %vm297 = vcmask 130048
    %v299 = vsel %vm297, %v104, 0
    %v302 = vsel %vm297, %v105, 0
    %v305 = vsel %vm297, %v106, 0
    %v308 = vsel %vm297, %v107, 0
    %v311 = vsel %vm297, %v108, 0
    %313 = vmatprep.subr.mxu0 0.0
    %314 = vmatpush1.msra.mxu0 %v292
    %315 = vmatprep.subr.mxu0 0.0
    %316 = vmatpush1.msra.mxu0 %v294
    %317 = vmatprep.subr.mxu0 0.0
    %318 = vmatpush1.msra.mxu0 0.0
    %319 = vmatprep.subr.mxu0 0.0
    %320 = vmatpush1.msra.mxu0 0.0
    %321 = vmatprep.subr.mxu0 0.0
    %322 = vmatpush1.msra.mxu0 0.0
    %323 = vmatprep.subr.mxu0 0.0
    %324 = vmatpush1.msra.mxu0 0.0
    %325 = vmatprep.subr.mxu0 0.0
    %326 = vmatpush1.msra.mxu0 0.0
    %327 = vmatprep.subr.mxu0 0.0
    %328 = vmatpush1.msra.mxu0 0.0
    %329 = vmatprep.subr.mxu0 0.0
    %330 = vmatpush1.msra.mxu0 0.0
    %331 = vmatprep.subr.mxu0 0.0
    %332 = vmatpush1.msra.mxu0 0.0
    %333 = vmatprep.subr.mxu0 0.0
    %334 = vmatpush1.msra.mxu0 0.0
    %335 = vmatprep.subr.mxu0 0.0
    %336 = vmatpush1.msra.mxu0 0.0
    %337 = vmatprep.subr.mxu0 0.0
    %338 = vmatpush1.msra.mxu0 0.0
    %339 = vmatprep.subr.mxu0 0.0
    %340 = vmatpush1.msra.mxu0 0.0
    %341 = vmatprep.subr.mxu0 0.0
    %342 = vmatpush1.msra.mxu0 0.0
    %343 = vmatprep.subr.mxu0 0.0
    %344 = vmatpush1.msra.mxu0 0.0
    %345 = vmatprep.subr.mxu0 0.0
    %346 = vmatpush1.msra.mxu0 0.0
    %347 = vmatprep.subr.mxu0 0.0
    %348 = vmatpush1.msra.mxu0 0.0
    %349 = vmatprep.subr.mxu0 0.0
    %350 = vmatpush1.msra.mxu0 0.0
    %351 = vmatprep.subr.mxu0 0.0
    %352 = vmatpush1.msra.mxu0 0.0
    %353 = vmatprep.subr.mxu0 0.0
    %354 = vmatpush1.msra.mxu0 0.0
    %355 = vmatprep.subr.mxu0 0.0
    %356 = vmatpush1.msra.mxu0 0.0
    %357 = vmatprep.subr.mxu0 0.0
    %358 = vmatpush1.msra.mxu0 0.0
    %359 = vmatprep.subr.mxu0 0.0
    %360 = vmatpush1.msra.mxu0 0.0
    %361 = vmatprep.subr.mxu0 0.0
    %362 = vmatpush1.msra.mxu0 0.0
    %363 = vmatprep.subr.mxu0 0.0
    %364 = vmatpush1.msra.mxu0 0.0
    %365 = vmatprep.subr.mxu0 0.0
    %366 = vmatpush1.msra.mxu0 0.0
    %367 = vmatprep.subr.mxu0 0.0
    %368 = vmatpush1.msra.mxu0 0.0
    %369 = vmatprep.subr.mxu0 0.0
    %370 = vmatpush1.msra.mxu0 0.0
    %371 = vmatprep.subr.mxu0 0.0
    %372 = vmatpush1.msra.mxu0 0.0
    %373 = vmatprep.subr.mxu0 0.0
    %374 = vmatpush1.msra.mxu0 0.0
    %375 = vmatprep.subr.mxu0 0.0
    %376 = vmatpush1.msra.mxu0 0.0
    %377 = vmatprep.mubr.f32.mxu0 0.0
    %378 = vmatmul.mubr.f32.gmra.mrb[0].mxu0 %v299
    %v379 = vpop.f32.mrb[0].mxu0
    %v380 = vadd.f32 0.0, %v379
    %v381 = vpop.f32.mrb[0].mxu0
    %382 = vmatprep.mubr.f32.mxu0 0.0
    %383 = vmatmul.mubr.f32.gmra.mrb[0].mxu0 %v302
    %v384 = vpop.f32.mrb[0].mxu0
    %v385 = vadd.f32 0.0, %v384
    %v386 = vpop.f32.mrb[0].mxu0
    %387 = vmatprep.mubr.f32.mxu0 0.0
    %388 = vmatmul.mubr.f32.gmra.mrb[0].mxu0 %v305
    %v389 = vpop.f32.mrb[0].mxu0
    %v390 = vadd.f32 0.0, %v389
    %v391 = vpop.f32.mrb[0].mxu0
    %392 = vmatprep.mubr.f32.mxu0 0.0
    %393 = vmatmul.mubr.f32.gmra.mrb[0].mxu0 %v308
    %v394 = vpop.f32.mrb[0].mxu0
    %v395 = vadd.f32 0.0, %v394
    %v396 = vpop.f32.mrb[0].mxu0
    %397 = vmatprep.mubr.f32.mxu0 0.0
    %398 = vmatmul.mubr.f32.gmra.mrb[0].mxu0 %v311
    %v399 = vpop.f32.mrb[0].mxu0
    %v400 = vadd.f32 0.0, %v399
    %v401 = vpop.f32.mrb[0].mxu0
    %402 = vdwg.mxu0
    %v404 = vsel %vm297, %v74, 0
    %v407 = vsel %vm297, %v75, 0
    %v410 = vsel %vm297, %v76, 0
    %v413 = vsel %vm297, %v77, 0
    %v416 = vsel %vm297, %v78, 0
    %418 = vmatprep.subr.mxu0 0.0
    %419 = vmatpush1.msra.mxu0 %v281
    %420 = vmatprep.subr.mxu0 0.0
    %421 = vmatpush1.msra.mxu0 %v286
    %422 = vmatprep.subr.mxu0 0.0
    %423 = vmatpush1.msra.mxu0 0.0
    %424 = vmatprep.subr.mxu0 0.0
    %425 = vmatpush1.msra.mxu0 0.0
    %426 = vmatprep.subr.mxu0 0.0
    %427 = vmatpush1.msra.mxu0 0.0
    %428 = vmatprep.subr.mxu0 0.0
    %429 = vmatpush1.msra.mxu0 0.0
    %430 = vmatprep.subr.mxu0 0.0
    %431 = vmatpush1.msra.mxu0 0.0
    %432 = vmatprep.subr.mxu0 0.0
    %433 = vmatpush1.msra.mxu0 0.0
    %434 = vmatprep.subr.mxu0 0.0
    %435 = vmatpush1.msra.mxu0 0.0
    %436 = vmatprep.subr.mxu0 0.0
    %437 = vmatpush1.msra.mxu0 0.0
    %438 = vmatprep.subr.mxu0 0.0
    %439 = vmatpush1.msra.mxu0 0.0
    %440 = vmatprep.subr.mxu0 0.0
    %441 = vmatpush1.msra.mxu0 0.0
    %442 = vmatprep.subr.mxu0 0.0
    %443 = vmatpush1.msra.mxu0 0.0
    %444 = vmatprep.subr.mxu0 0.0
    %445 = vmatpush1.msra.mxu0 0.0
    %446 = vmatprep.subr.mxu0 0.0
    %447 = vmatpush1.msra.mxu0 0.0
    %448 = vmatprep.subr.mxu0 0.0
    %449 = vmatpush1.msra.mxu0 0.0
    %450 = vmatprep.subr.mxu0 0.0
    %451 = vmatpush1.msra.mxu0 0.0
    %452 = vmatprep.subr.mxu0 0.0
    %453 = vmatpush1.msra.mxu0 0.0
    %454 = vmatprep.subr.mxu0 0.0
    %455 = vmatpush1.msra.mxu0 0.0
    %456 = vmatprep.subr.mxu0 0.0
    %457 = vmatpush1.msra.mxu0 0.0
    %458 = vmatprep.subr.mxu0 0.0
    %459 = vmatpush1.msra.mxu0 0.0
    %460 = vmatprep.subr.mxu0 0.0
    %461 = vmatpush1.msra.mxu0 0.0
    %462 = vmatprep.subr.mxu0 0.0
    %463 = vmatpush1.msra.mxu0 0.0
    %464 = vmatprep.subr.mxu0 0.0
    %465 = vmatpush1.msra.mxu0 0.0
    %466 = vmatprep.subr.mxu0 0.0
    %467 = vmatpush1.msra.mxu0 0.0
    %468 = vmatprep.subr.mxu0 0.0
    %469 = vmatpush1.msra.mxu0 0.0
    %470 = vmatprep.subr.mxu0 0.0
    %471 = vmatpush1.msra.mxu0 0.0
    %472 = vmatprep.subr.mxu0 0.0
    %473 = vmatpush1.msra.mxu0 0.0
    %474 = vmatprep.subr.mxu0 0.0
    %475 = vmatpush1.msra.mxu0 0.0
    %476 = vmatprep.subr.mxu0 0.0
    %477 = vmatpush1.msra.mxu0 0.0
    %478 = vmatprep.subr.mxu0 0.0
    %479 = vmatpush1.msra.mxu0 0.0
    %480 = vmatprep.subr.mxu0 0.0
    %481 = vmatpush1.msra.mxu0 0.0
    %482 = vmatprep.mubr.f32.mxu0 0.0
    %483 = vmatmul.mubr.f32.gmra.mrb[0].mxu0 %v404
    %v484 = vpop.f32.mrb[0].mxu0
    %v485 = vadd.f32 %v380, %v484
    %v486 = vpop.f32.mrb[0].mxu0
    %487 = vmatprep.mubr.f32.mxu0 0.0
    %488 = vmatmul.mubr.f32.gmra.mrb[0].mxu0 %v407
    %v489 = vpop.f32.mrb[0].mxu0
    %v490 = vadd.f32 %v385, %v489
    %v491 = vpop.f32.mrb[0].mxu0
    %492 = vmatprep.mubr.f32.mxu0 0.0
    %493 = vmatmul.mubr.f32.gmra.mrb[0].mxu0 %v410
    %v494 = vpop.f32.mrb[0].mxu0
    %v495 = vadd.f32 %v390, %v494
    %v496 = vpop.f32.mrb[0].mxu0
    %497 = vmatprep.mubr.f32.mxu0 0.0
    %498 = vmatmul.mubr.f32.gmra.mrb[0].mxu0 %v413
    %v499 = vpop.f32.mrb[0].mxu0
    %v500 = vadd.f32 %v395, %v499
    %v501 = vpop.f32.mrb[0].mxu0
    %502 = vmatprep.mubr.f32.mxu0 0.0
    %503 = vmatmul.mubr.f32.gmra.mrb[0].mxu0 %v416
    %v504 = vpop.f32.mrb[0].mxu0
    %v505 = vadd.f32 %v400, %v504
    %v506 = vpop.f32.mrb[0].mxu0
    %507 = vdwg.mxu0
    %v508 = vstv %s134
    %v509 = vadd.f32 %v485, %v508
    %v510 = vadd.f32 %v490, %v508
    %v511 = vadd.f32 %v495, %v508
    %v512 = vadd.f32 %v500, %v508
    %v513 = vadd.f32 %v505, %v508
    %vm514 = vcmp.gt.f32.partialorder %v509, 0.0
    %vm515 = vcmp.gt.f32.partialorder %v510, 0.0
    %vm516 = vcmp.gt.f32.partialorder %v511, 0.0
    %vm517 = vcmp.gt.f32.partialorder %v512, 0.0
    %vm518 = vcmp.gt.f32.partialorder %v513, 0.0
    %v519 = vmul.f32 %v509, 0.2
    %v520 = vmul.f32 %v510, 0.2
    %v521 = vmul.f32 %v511, 0.2
    %v522 = vmul.f32 %v512, 0.2
    %v523 = vmul.f32 %v513, 0.2
    %v524 = vsel %vm514, %v509, %v519
    %v525 = vsel %vm515, %v510, %v520
    %v526 = vsel %vm516, %v511, %v521
    %v527 = vsel %vm517, %v512, %v522
    %v528 = vsel %vm518, %v513, %v523
    %v529 = vsel %vm109, %v524, -1e+30
    %v530 = vsel %vm110, %v525, -1e+30
    %v531 = vsel %vm111, %v526, -1e+30
    %v532 = vsel %vm112, %v527, -1e+30
    %v533 = vsel %vm113, %v528, -1e+30
    %vm534 = vcmp.gt.f32.partialorder %v104, 0.0
    %vm535 = vcmp.gt.f32.partialorder %v105, 0.0
    %vm536 = vcmp.gt.f32.partialorder %v106, 0.0
    %vm537 = vcmp.gt.f32.partialorder %v107, 0.0
    %vm538 = vcmp.gt.f32.partialorder %v108, 0.0
    %540 = vset.pattern.permute.xlu0 0
    %541 = vperm.xlu0 %540, %v529
    %v542 = vpop.permute.xlu0 %541
    %545 = vset.pattern.permute.xlu0 0
    %546 = vperm.xlu0 %545, %v530
    %v547 = vpop.permute.xlu0 %546
    %550 = vset.pattern.permute.xlu0 0
    %551 = vperm.xlu0 %550, %v531
    %v552 = vpop.permute.xlu0 %551
    %555 = vset.pattern.permute.xlu0 0
    %556 = vperm.xlu0 %555, %v532
    %v557 = vpop.permute.xlu0 %556
    %560 = vset.pattern.permute.xlu0 0
    %561 = vperm.xlu0 %560, %v533
    %v562 = vpop.permute.xlu0 %561
    %v564 = vsel %vm534, %v542, -1e+30
    %v565 = vsel %vm535, %v547, -1e+30
    %v566 = vsel %vm536, %v552, -1e+30
    %v567 = vsel %vm537, %v557, -1e+30
    %v568 = vsel %vm538, %v562, -1e+30
    %v569 = vsel %vm297, %v564, -inf
    %v570 = vsel %vm297, %v565, -inf
    %v571 = vsel %vm297, %v566, -inf
    %v572 = vsel %vm297, %v567, -inf
    %v573 = vsel %vm297, %v568, -inf
    %v574 = vmax.f32 %v569, %v573
    %v575 = vmax.f32 %v574, %v570
    %v576 = vmax.f32 %v571, %v572
    %v577 = vmax.f32 %v575, %v576
    %v578 = vrot.slane %v577, 4
    %v579 = vmax.f32 %v577, %v578
    %v580 = vrot.slane %v579, 2
    %v581 = vmax.f32 %v579, %v580
    %v582 = vrot.slane %v581, 1
    %v583 = vmax.f32 %v581, %v582
    %v584 = vmul.f32 %v104, %v583
    %v585 = vmul.f32 %v105, %v583
    %v586 = vmul.f32 %v106, %v583
    %v587 = vmul.f32 %v107, %v583
    %v588 = vmul.f32 %v108, %v583
    %v589 = vsel %vm297, %v584, 0.0
    %590 = vadd.xlane.f32.xlu0 %v589
    %v591 = vpop.xlane.xlu0 %590
    %v592 = vsel %vm297, %v585, 0.0
    %593 = vadd.xlane.f32.xlu0 %v592
    %v594 = vpop.xlane.xlu0 %593
    %v595 = vsel %vm297, %v586, 0.0
    %596 = vadd.xlane.f32.xlu0 %v595
    %v597 = vpop.xlane.xlu0 %596
    %v598 = vsel %vm297, %v587, 0.0
    %599 = vadd.xlane.f32.xlu0 %v598
    %v600 = vpop.xlane.xlu0 %599
    %v601 = vsel %vm297, %v588, 0.0
    %602 = vadd.xlane.f32.xlu0 %v601
    %v603 = vpop.xlane.xlu0 %602
    %v604 = vsub.f32 %v529, %v591
    %v605 = vsub.f32 %v530, %v594
    %v606 = vsub.f32 %v531, %v597
    %v607 = vsub.f32 %v532, %v600
    %v608 = vsub.f32 %v533, %v603
    %v609 = vmul.f32 %v604, 1.442695
    %v610 = vpow.pop %v609
    %v611 = vmul.f32 %v605, 1.442695
    %v612 = vpow.pop %v611
    %v613 = vmul.f32 %v606, 1.442695
    %v614 = vpow.pop %v613
    %v615 = vmul.f32 %v607, 1.442695
    %v616 = vpow.pop %v615
    %v617 = vmul.f32 %v608, 1.442695
    %v618 = vpow.pop %v617
    %620 = vset.pattern.permute.xlu0 0
    %621 = vperm.xlu0 %620, %v610
    %v622 = vpop.permute.xlu0 %621
    %625 = vset.pattern.permute.xlu0 0
    %626 = vperm.xlu0 %625, %v612
    %v627 = vpop.permute.xlu0 %626
    %630 = vset.pattern.permute.xlu0 0
    %631 = vperm.xlu0 %630, %v614
    %v632 = vpop.permute.xlu0 %631
    %635 = vset.pattern.permute.xlu0 0
    %636 = vperm.xlu0 %635, %v616
    %v637 = vpop.permute.xlu0 %636
    %640 = vset.pattern.permute.xlu0 0
    %641 = vperm.xlu0 %640, %v618
    %v642 = vpop.permute.xlu0 %641
    %v644 = vmul.f32 %v104, %v622
    %v645 = vmul.f32 %v105, %v627
    %v646 = vmul.f32 %v106, %v632
    %v647 = vmul.f32 %v107, %v637
    %v648 = vmul.f32 %v108, %v642
    %v649 = vsel %vm297, %v644, 0.0
    %v650 = vsel %vm297, %v645, 0.0
    %v651 = vadd.f32 %v649, %v650
    %v652 = vsel %vm297, %v646, 0.0
    %v653 = vadd.f32 %v651, %v652
    %v654 = vsel %vm297, %v647, 0.0
    %v655 = vadd.f32 %v653, %v654
    %v656 = vsel %vm297, %v648, 0.0
    %v657 = vadd.f32 %v655, %v656
    %v658 = vrot.slane %v657, 4
    %v659 = vadd.f32 %v657, %v658
    %v660 = vrot.slane %v659, 2
    %v661 = vadd.f32 %v659, %v660
    %v662 = vrot.slane %v661, 1
    %v663 = vadd.f32 %v661, %v662
    %vm664 = vcmp.gt.f32.partialorder %v663, 0.0
    %v665 = vrcp.pop %v663
    %v666 = vsel %vm664, %v665, 0.0
    %v667 = vmul.f32 %v104, %v666
    %v668 = vmul.f32 %v105, %v666
    %v669 = vmul.f32 %v106, %v666
    %v670 = vmul.f32 %v107, %v666
    %v671 = vmul.f32 %v108, %v666
    %v672 = vsel %vm297, %v667, 0.0
    %673 = vadd.xlane.f32.xlu0 %v672
    %v674 = vpop.xlane.xlu0 %673
    %v675 = vsel %vm297, %v668, 0.0
    %676 = vadd.xlane.f32.xlu0 %v675
    %v677 = vpop.xlane.xlu0 %676
    %v678 = vsel %vm297, %v669, 0.0
    %679 = vadd.xlane.f32.xlu0 %v678
    %v680 = vpop.xlane.xlu0 %679
    %v681 = vsel %vm297, %v670, 0.0
    %682 = vadd.xlane.f32.xlu0 %v681
    %v683 = vpop.xlane.xlu0 %682
    %v684 = vsel %vm297, %v671, 0.0
    %685 = vadd.xlane.f32.xlu0 %v684
    %v686 = vpop.xlane.xlu0 %685
    %v687 = vmul.f32 %v610, %v674
    %v688 = vmul.f32 %v612, %v677
    %v689 = vmul.f32 %v614, %v680
    %v690 = vmul.f32 %v616, %v683
    %v691 = vmul.f32 %v618, %v686
    %692 = vmatprep.subr.mxu0 0.0
    %693 = vmatpush1.msra.mxu0 %v206
    %694 = vmatprep.subr.mxu0 0.0
    %695 = vmatpush1.msra.mxu0 %v211
    %696 = vmatprep.subr.mxu0 0.0
    %697 = vmatpush1.msra.mxu0 0.0
    %698 = vmatprep.subr.mxu0 0.0
    %699 = vmatpush1.msra.mxu0 0.0
    %700 = vmatprep.subr.mxu0 0.0
    %701 = vmatpush1.msra.mxu0 0.0
    %702 = vmatprep.subr.mxu0 0.0
    %703 = vmatpush1.msra.mxu0 0.0
    %704 = vmatprep.subr.mxu0 0.0
    %705 = vmatpush1.msra.mxu0 0.0
    %706 = vmatprep.subr.mxu0 0.0
    %707 = vmatpush1.msra.mxu0 0.0
    %708 = vmatprep.subr.mxu0 0.0
    %709 = vmatpush1.msra.mxu0 0.0
    %710 = vmatprep.subr.mxu0 0.0
    %711 = vmatpush1.msra.mxu0 0.0
    %712 = vmatprep.subr.mxu0 0.0
    %713 = vmatpush1.msra.mxu0 0.0
    %714 = vmatprep.subr.mxu0 0.0
    %715 = vmatpush1.msra.mxu0 0.0
    %716 = vmatprep.subr.mxu0 0.0
    %717 = vmatpush1.msra.mxu0 0.0
    %718 = vmatprep.subr.mxu0 0.0
    %719 = vmatpush1.msra.mxu0 0.0
    %720 = vmatprep.subr.mxu0 0.0
    %721 = vmatpush1.msra.mxu0 0.0
    %722 = vmatprep.subr.mxu0 0.0
    %723 = vmatpush1.msra.mxu0 0.0
    %724 = vmatprep.subr.mxu0 0.0
    %725 = vmatpush1.msra.mxu0 0.0
    %726 = vmatprep.subr.mxu0 0.0
    %727 = vmatpush1.msra.mxu0 0.0
    %728 = vmatprep.subr.mxu0 0.0
    %729 = vmatpush1.msra.mxu0 0.0
    %730 = vmatprep.subr.mxu0 0.0
    %731 = vmatpush1.msra.mxu0 0.0
    %732 = vmatprep.subr.mxu0 0.0
    %733 = vmatpush1.msra.mxu0 0.0
    %734 = vmatprep.subr.mxu0 0.0
    %735 = vmatpush1.msra.mxu0 0.0
    %736 = vmatprep.subr.mxu0 0.0
    %737 = vmatpush1.msra.mxu0 0.0
    %738 = vmatprep.subr.mxu0 0.0
    %739 = vmatpush1.msra.mxu0 0.0
    %740 = vmatprep.subr.mxu0 0.0
    %741 = vmatpush1.msra.mxu0 0.0
    %742 = vmatprep.subr.mxu0 0.0
    %743 = vmatpush1.msra.mxu0 0.0
    %744 = vmatprep.subr.mxu0 0.0
    %745 = vmatpush1.msra.mxu0 0.0
    %746 = vmatprep.subr.mxu0 0.0
    %747 = vmatpush1.msra.mxu0 0.0
    %748 = vmatprep.subr.mxu0 0.0
    %749 = vmatpush1.msra.mxu0 0.0
    %750 = vmatprep.subr.mxu0 0.0
    %751 = vmatpush1.msra.mxu0 0.0
    %752 = vmatprep.subr.mxu0 0.0
    %753 = vmatpush1.msra.mxu0 0.0
    %754 = vmatprep.subr.mxu0 0.0
    %755 = vmatpush1.msra.mxu0 0.0
    %756 = vmatprep.mubr.f32.mxu0 0.0
    %757 = vmatmul.mubr.f32.gmra.mrb[0].mxu0 %v404
    %v758 = vpop.f32.mrb[0].mxu0
    %v759 = vadd.f32 0.0, %v758
    %v760 = vpop.f32.mrb[0].mxu0
    %761 = vmatprep.mubr.f32.mxu0 0.0
    %762 = vmatmul.mubr.f32.gmra.mrb[0].mxu0 %v407
    %v763 = vpop.f32.mrb[0].mxu0
    %v764 = vadd.f32 0.0, %v763
    %v765 = vpop.f32.mrb[0].mxu0
    %766 = vmatprep.mubr.f32.mxu0 0.0
    %767 = vmatmul.mubr.f32.gmra.mrb[0].mxu0 %v410
    %v768 = vpop.f32.mrb[0].mxu0
    %v769 = vadd.f32 0.0, %v768
    %v770 = vpop.f32.mrb[0].mxu0
    %771 = vmatprep.mubr.f32.mxu0 0.0
    %772 = vmatmul.mubr.f32.gmra.mrb[0].mxu0 %v413
    %v773 = vpop.f32.mrb[0].mxu0
    %v774 = vadd.f32 0.0, %v773
    %v775 = vpop.f32.mrb[0].mxu0
    %776 = vmatprep.mubr.f32.mxu0 0.0
    %777 = vmatmul.mubr.f32.gmra.mrb[0].mxu0 %v416
    %v778 = vpop.f32.mrb[0].mxu0
    %v779 = vadd.f32 0.0, %v778
    %v780 = vpop.f32.mrb[0].mxu0
    %781 = vdwg.mxu0
    %783 = vset.pattern.permute.xlu0 0
    %784 = vperm.xlu0 %783, %v687
    %v785 = vpop.permute.xlu0 %784
    %788 = vset.pattern.permute.xlu0 0
    %789 = vperm.xlu0 %788, %v688
    %v790 = vpop.permute.xlu0 %789
    %793 = vset.pattern.permute.xlu0 0
    %794 = vperm.xlu0 %793, %v689
    %v795 = vpop.permute.xlu0 %794
    %798 = vset.pattern.permute.xlu0 0
    %799 = vperm.xlu0 %798, %v690
    %v800 = vpop.permute.xlu0 %799
    %803 = vset.pattern.permute.xlu0 0
    %804 = vperm.xlu0 %803, %v691
    %v805 = vpop.permute.xlu0 %804
    %v807 = vmul.f32 %v785, %v759
    %v808 = vmul.f32 %v790, %v764
    %v809 = vmul.f32 %v795, %v769
    %v810 = vmul.f32 %v800, %v774
    %v811 = vmul.f32 %v805, %v779
    %812 = vxpose.xlu0.b32.start [1/16] %v104, 128
    %813 = vxpose.xlu0.b32.cont [2/16] %v105, 128
    %814 = vxpose.xlu0.b32.cont [3/16] %v106, 128
    %815 = vxpose.xlu0.b32.cont [4/16] %v107, 128
    %816 = vxpose.xlu0.b32.cont [5/16] %v108, 128
    %817 = vxpose.xlu0.b32.cont [6/16] 0.0, 128
    %818 = vxpose.xlu0.b32.cont [7/16] 0.0, 128
    %819 = vxpose.xlu0.b32.cont [8/16] 0.0, 128
    %820 = vxpose.xlu0.b32.cont [9/16] 0.0, 128
    %821 = vxpose.xlu0.b32.cont [10/16] 0.0, 128
    %822 = vxpose.xlu0.b32.cont [11/16] 0.0, 128
    %823 = vxpose.xlu0.b32.cont [12/16] 0.0, 128
    %824 = vxpose.xlu0.b32.cont [13/16] 0.0, 128
    %825 = vxpose.xlu0.b32.cont [14/16] 0.0, 128
    %826 = vxpose.xlu0.b32.cont [15/16] 0.0, 128
    %827 = vxpose.xlu0.b32.end [16/16] 0.0, 128
    %v828 = vpop.trf.xlu0
    %v829 = vpop.trf.xlu0
    %v830 = vpop.trf.xlu0
    %v831 = vpop.trf.xlu0
    %v832 = vpop.trf.xlu0
    %v833 = vpop.trf.xlu0
    %v834 = vpop.trf.xlu0
    %v835 = vpop.trf.xlu0
    %v836 = vpop.trf.xlu0
    %v837 = vpop.trf.xlu0
    %v838 = vpop.trf.xlu0
    %v839 = vpop.trf.xlu0
    %v840 = vpop.trf.xlu0
    %v841 = vpop.trf.xlu0
    %v842 = vpop.trf.xlu0
    %v843 = vpop.trf.xlu0
    %vm844 = vcmask 326656
    %v846 = vsel %vm844, %v828, 0
    %v849 = vsel %vm844, %v829, 0
    %851 = vmatprep.subr.mxu0 0.0
    %852 = vmatpush1.msra.mxu0 %v807
    %853 = vmatprep.subr.mxu0 0.0
    %854 = vmatpush1.msra.mxu0 %v808
    %855 = vmatprep.subr.mxu0 0.0
    %856 = vmatpush1.msra.mxu0 %v809
    %857 = vmatprep.subr.mxu0 0.0
    %858 = vmatpush1.msra.mxu0 %v810
    %859 = vmatprep.subr.mxu0 0.0
    %860 = vmatpush1.msra.mxu0 %v811
    %861 = vmatprep.subr.mxu0 0.0
    %862 = vmatpush1.msra.mxu0 0.0
    %863 = vmatprep.subr.mxu0 0.0
    %864 = vmatpush1.msra.mxu0 0.0
    %865 = vmatprep.subr.mxu0 0.0
    %866 = vmatpush1.msra.mxu0 0.0
    %867 = vmatprep.subr.mxu0 0.0
    %868 = vmatpush1.msra.mxu0 0.0
    %869 = vmatprep.subr.mxu0 0.0
    %870 = vmatpush1.msra.mxu0 0.0
    %871 = vmatprep.subr.mxu0 0.0
    %872 = vmatpush1.msra.mxu0 0.0
    %873 = vmatprep.subr.mxu0 0.0
    %874 = vmatpush1.msra.mxu0 0.0
    %875 = vmatprep.subr.mxu0 0.0
    %876 = vmatpush1.msra.mxu0 0.0
    %877 = vmatprep.subr.mxu0 0.0
    %878 = vmatpush1.msra.mxu0 0.0
    %879 = vmatprep.subr.mxu0 0.0
    %880 = vmatpush1.msra.mxu0 0.0
    %881 = vmatprep.subr.mxu0 0.0
    %882 = vmatpush1.msra.mxu0 0.0
    %883 = vmatprep.subr.mxu0 0.0
    %884 = vmatpush1.msra.mxu0 0.0
    %885 = vmatprep.subr.mxu0 0.0
    %886 = vmatpush1.msra.mxu0 0.0
    %887 = vmatprep.subr.mxu0 0.0
    %888 = vmatpush1.msra.mxu0 0.0
    %889 = vmatprep.subr.mxu0 0.0
    %890 = vmatpush1.msra.mxu0 0.0
    %891 = vmatprep.subr.mxu0 0.0
    %892 = vmatpush1.msra.mxu0 0.0
    %893 = vmatprep.subr.mxu0 0.0
    %894 = vmatpush1.msra.mxu0 0.0
    %895 = vmatprep.subr.mxu0 0.0
    %896 = vmatpush1.msra.mxu0 0.0
    %897 = vmatprep.subr.mxu0 0.0
    %898 = vmatpush1.msra.mxu0 0.0
    %899 = vmatprep.subr.mxu0 0.0
    %900 = vmatpush1.msra.mxu0 0.0
    %901 = vmatprep.subr.mxu0 0.0
    %902 = vmatpush1.msra.mxu0 0.0
    %903 = vmatprep.subr.mxu0 0.0
    %904 = vmatpush1.msra.mxu0 0.0
    %905 = vmatprep.subr.mxu0 0.0
    %906 = vmatpush1.msra.mxu0 0.0
    %907 = vmatprep.subr.mxu0 0.0
    %908 = vmatpush1.msra.mxu0 0.0
    %909 = vmatprep.subr.mxu0 0.0
    %910 = vmatpush1.msra.mxu0 0.0
    %911 = vmatprep.subr.mxu0 0.0
    %912 = vmatpush1.msra.mxu0 0.0
    %913 = vmatprep.subr.mxu0 0.0
    %914 = vmatpush1.msra.mxu0 0.0
    %915 = vmatprep.mubr.f32.mxu0 0.0
    %916 = vmatmul.mubr.f32.gmra.mrb[0].mxu0 %v846
    %v917 = vpop.f32.mrb[0].mxu0
    %v918 = vadd.f32 0.0, %v917
    %v919 = vpop.f32.mrb[0].mxu0
    %920 = vmatprep.mubr.f32.mxu0 0.0
    %921 = vmatmul.mubr.f32.gmra.mrb[0].mxu0 %v849
    %v922 = vpop.f32.mrb[0].mxu0
    %v923 = vadd.f32 0.0, %v922
    %v924 = vpop.f32.mrb[0].mxu0
    %925 = vdwg.mxu0
    %s926 = scalar_lea.vmem %s1, 128
    %v927 = vld [vmem:[%s926] sm:$0xff]
    %v928 = vld [vmem:[%s926 + $0x8] sm:$0xff]
    %v929 = vld [vmem:[%s926 + $0x10] sm:$0xff]
    %v930 = vld [vmem:[%s926 + $0x18] sm:$0xff]
    %v931 = vld [vmem:[%s926 + $0x20] sm:$0xff]
    %v932 = vld [vmem:[%s926 + $0x28] sm:$0xff]
    %v933 = vld [vmem:[%s926 + $0x30] sm:$0xff]
    %v934 = vld [vmem:[%s926 + $0x38] sm:$0xff]
    %v935 = vld [vmem:[%s926 + $0x40] sm:$0xff]
    %v936 = vld [vmem:[%s926 + $0x48] sm:$0xff]
    %v937 = vld [vmem:[%s926 + $0x50] sm:$0xff]
    %v938 = vld [vmem:[%s926 + $0x58] sm:$0xff]
    %v939 = vld [vmem:[%s926 + $0x60] sm:$0xff]
    %v940 = vld [vmem:[%s926 + $0x68] sm:$0xff]
    %v941 = vld [vmem:[%s926 + $0x70] sm:$0xff]
    %v942 = vld [vmem:[%s926 + $0x78] sm:$0xff]
    %s943 = scalar_lea.vmem %s2, 8
    %v944 = vld [vmem:[%s943] sm:$0x1]
    %v945 = vld [vmem:[%s943 + $0x1] sm:$0x3]
    %s946 = sld [smem:[#allocation2 + $0x1]]
    %v947 = vlaneseq
    %v948 = vshrl.u32 %v947, 7
    %v949 = vsub.s32 0, %v948
    %v950 = vrot.slane %v944, %v949
    %951 = vmatprep.subr.mxu0 0.0
    %952 = vmatpush1.msra.mxu0 %v927
    %953 = vmatprep.subr.mxu0 0.0
    %954 = vmatpush1.msra.mxu0 %v928
    %955 = vmatprep.subr.mxu0 0.0
    %956 = vmatpush1.msra.mxu0 %v929
    %957 = vmatprep.subr.mxu0 0.0
    %958 = vmatpush1.msra.mxu0 %v930
    %959 = vmatprep.subr.mxu0 0.0
    %960 = vmatpush1.msra.mxu0 %v931
    %961 = vmatprep.subr.mxu0 0.0
    %962 = vmatpush1.msra.mxu0 %v932
    %963 = vmatprep.subr.mxu0 0.0
    %964 = vmatpush1.msra.mxu0 %v933
    %965 = vmatprep.subr.mxu0 0.0
    %966 = vmatpush1.msra.mxu0 %v934
    %967 = vmatprep.subr.mxu0 0.0
    %968 = vmatpush1.msra.mxu0 %v935
    %969 = vmatprep.subr.mxu0 0.0
    %970 = vmatpush1.msra.mxu0 %v936
    %971 = vmatprep.subr.mxu0 0.0
    %972 = vmatpush1.msra.mxu0 %v937
    %973 = vmatprep.subr.mxu0 0.0
    %974 = vmatpush1.msra.mxu0 %v938
    %975 = vmatprep.subr.mxu0 0.0
    %976 = vmatpush1.msra.mxu0 %v939
    %977 = vmatprep.subr.mxu0 0.0
    %978 = vmatpush1.msra.mxu0 %v940
    %979 = vmatprep.subr.mxu0 0.0
    %980 = vmatpush1.msra.mxu0 %v941
    %981 = vmatprep.subr.mxu0 0.0
    %982 = vmatpush1.msra.mxu0 %v942
    %983 = vmatprep.subr.mxu0 0.0
    %984 = vmatpush1.msra.mxu0 0.0
    %985 = vmatprep.subr.mxu0 0.0
    %986 = vmatpush1.msra.mxu0 0.0
    %987 = vmatprep.subr.mxu0 0.0
    %988 = vmatpush1.msra.mxu0 0.0
    %989 = vmatprep.subr.mxu0 0.0
    %990 = vmatpush1.msra.mxu0 0.0
    %991 = vmatprep.subr.mxu0 0.0
    %992 = vmatpush1.msra.mxu0 0.0
    %993 = vmatprep.subr.mxu0 0.0
    %994 = vmatpush1.msra.mxu0 0.0
    %995 = vmatprep.subr.mxu0 0.0
    %996 = vmatpush1.msra.mxu0 0.0
    %997 = vmatprep.subr.mxu0 0.0
    %998 = vmatpush1.msra.mxu0 0.0
    %999 = vmatprep.subr.mxu0 0.0
    %1000 = vmatpush1.msra.mxu0 0.0
    %1001 = vmatprep.subr.mxu0 0.0
    %1002 = vmatpush1.msra.mxu0 0.0
    %1003 = vmatprep.subr.mxu0 0.0
    %1004 = vmatpush1.msra.mxu0 0.0
    %1005 = vmatprep.subr.mxu0 0.0
    %1006 = vmatpush1.msra.mxu0 0.0
    %1007 = vmatprep.subr.mxu0 0.0
    %1008 = vmatpush1.msra.mxu0 0.0
    %1009 = vmatprep.subr.mxu0 0.0
    %1010 = vmatpush1.msra.mxu0 0.0
    %1011 = vmatprep.subr.mxu0 0.0
    %1012 = vmatpush1.msra.mxu0 0.0
    %1013 = vmatprep.subr.mxu0 0.0
    %1014 = vmatpush1.msra.mxu0 0.0
    %1015 = vmatprep.mubr.f32.mxu0 0.0
    %1016 = vmatmul.mubr.f32.gmra.mrb[0].mxu0 %v918
    %v1017 = vpop.f32.mrb[0].mxu0
    %v1018 = vadd.f32 %v950, %v1017
    %v1019 = vpop.f32.mrb[0].mxu0
    %1020 = vmatprep.mubr.f32.mxu0 0.0
    %1021 = vmatmul.mubr.f32.gmra.mrb[0].mxu0 %v923
    %v1022 = vpop.f32.mrb[0].mxu0
    %v1023 = vadd.f32 %v950, %v1022
    %v1024 = vpop.f32.mrb[0].mxu0
    %1025 = vdwg.mxu0
    %1026 = vmatprep.subr.mxu0 0.0
    %1027 = vmatpush1.xpose.msra.mxu0 %v945
    %1028 = vmatprep.subr.mxu0 0.0
    %1029 = vmatpush1.xpose.msra.mxu0 0.0
    %1030 = vmatprep.subr.mxu0 0.0
    %1031 = vmatpush1.xpose.msra.mxu0 0.0
    %1032 = vmatprep.subr.mxu0 0.0
    %1033 = vmatpush1.xpose.msra.mxu0 0.0
    %1034 = vmatprep.subr.mxu0 0.0
    %1035 = vmatpush1.xpose.msra.mxu0 0.0
    %1036 = vmatprep.subr.mxu0 0.0
    %1037 = vmatpush1.xpose.msra.mxu0 0.0
    %1038 = vmatprep.subr.mxu0 0.0
    %1039 = vmatpush1.xpose.msra.mxu0 0.0
    %1040 = vmatprep.subr.mxu0 0.0
    %1041 = vmatpush1.xpose.msra.mxu0 0.0
    %1042 = vmatprep.subr.mxu0 0.0
    %1043 = vmatpush1.xpose.msra.mxu0 0.0
    %1044 = vmatprep.subr.mxu0 0.0
    %1045 = vmatpush1.xpose.msra.mxu0 0.0
    %1046 = vmatprep.subr.mxu0 0.0
    %1047 = vmatpush1.xpose.msra.mxu0 0.0
    %1048 = vmatprep.subr.mxu0 0.0
    %1049 = vmatpush1.xpose.msra.mxu0 0.0
    %1050 = vmatprep.subr.mxu0 0.0
    %1051 = vmatpush1.xpose.msra.mxu0 0.0
    %1052 = vmatprep.subr.mxu0 0.0
    %1053 = vmatpush1.xpose.msra.mxu0 0.0
    %1054 = vmatprep.subr.mxu0 0.0
    %1055 = vmatpush1.xpose.msra.mxu0 0.0
    %1056 = vmatprep.subr.mxu0 0.0
    %1057 = vmatpush1.xpose.msra.mxu0 0.0
    %1058 = vmatprep.subr.mxu0 0.0
    %1059 = vmatpush1.xpose.msra.mxu0 0.0
    %1060 = vmatprep.subr.mxu0 0.0
    %1061 = vmatpush1.xpose.msra.mxu0 0.0
    %1062 = vmatprep.subr.mxu0 0.0
    %1063 = vmatpush1.xpose.msra.mxu0 0.0
    %1064 = vmatprep.subr.mxu0 0.0
    %1065 = vmatpush1.xpose.msra.mxu0 0.0
    %1066 = vmatprep.subr.mxu0 0.0
    %1067 = vmatpush1.xpose.msra.mxu0 0.0
    %1068 = vmatprep.subr.mxu0 0.0
    %1069 = vmatpush1.xpose.msra.mxu0 0.0
    %1070 = vmatprep.subr.mxu0 0.0
    %1071 = vmatpush1.xpose.msra.mxu0 0.0
    %1072 = vmatprep.subr.mxu0 0.0
    %1073 = vmatpush1.xpose.msra.mxu0 0.0
    %1074 = vmatprep.subr.mxu0 0.0
    %1075 = vmatpush1.xpose.msra.mxu0 0.0
    %1076 = vmatprep.subr.mxu0 0.0
    %1077 = vmatpush1.xpose.msra.mxu0 0.0
    %1078 = vmatprep.subr.mxu0 0.0
    %1079 = vmatpush1.xpose.msra.mxu0 0.0
    %1080 = vmatprep.subr.mxu0 0.0
    %1081 = vmatpush1.xpose.msra.mxu0 0.0
    %1082 = vmatprep.subr.mxu0 0.0
    %1083 = vmatpush1.xpose.msra.mxu0 0.0
    %1084 = vmatprep.subr.mxu0 0.0
    %1085 = vmatpush1.xpose.msra.mxu0 0.0
    %1086 = vmatprep.subr.mxu0 0.0
    %1087 = vmatpush1.xpose.msra.mxu0 0.0
    %1088 = vmatprep.subr.mxu0 0.0
    %1089 = vmatpush1.xpose.msra.mxu0 0.0
    %1090 = vmatprep.mubr.f32.mxu0 0.0
    %1091 = vmatmul.mubr.f32.gmra.mrb[0].mxu0 %v1018
    %v1092 = vpop.f32.mrb[0].mxu0
    %v1093 = vadd.f32 0.0, %v1092
    %v1094 = vpop.f32.mrb[0].mxu0
    %1095 = vmatprep.mubr.f32.mxu0 0.0
    %1096 = vmatmul.mubr.f32.gmra.mrb[0].mxu0 %v1023
    %v1097 = vpop.f32.mrb[0].mxu0
    %v1098 = vadd.f32 0.0, %v1097
    %v1099 = vpop.f32.mrb[0].mxu0
    %1100 = vdwg.mxu0
    %1103 = vrot.lane.b32.xlu0 %v1093, 127
    %v1104 = vpop.permute.xlu0 %1103
    %1105 = vrot.lane.b32.xlu0 %v1098, 127
    %v1106 = vpop.permute.xlu0 %1105
    %1109 = vmatprep.subr.mxu0 0.0
    %1110 = vmatpush1.msra.mxu0 %v1104
    %1111 = vmatprep.subr.mxu0 0.0
    %1112 = vmatpush1.msra.mxu0 %v1106
    %1113 = vmatprep.subr.mxu0 0.0
    %1114 = vmatpush1.msra.mxu0 0.0
    %1115 = vmatprep.subr.mxu0 0.0
    %1116 = vmatpush1.msra.mxu0 0.0
    %1117 = vmatprep.subr.mxu0 0.0
    %1118 = vmatpush1.msra.mxu0 0.0
    %1119 = vmatprep.subr.mxu0 0.0
    %1120 = vmatpush1.msra.mxu0 0.0
    %1121 = vmatprep.subr.mxu0 0.0
    %1122 = vmatpush1.msra.mxu0 0.0
    %1123 = vmatprep.subr.mxu0 0.0
    %1124 = vmatpush1.msra.mxu0 0.0
    %1125 = vmatprep.subr.mxu0 0.0
    %1126 = vmatpush1.msra.mxu0 0.0
    %1127 = vmatprep.subr.mxu0 0.0
    %1128 = vmatpush1.msra.mxu0 0.0
    %1129 = vmatprep.subr.mxu0 0.0
    %1130 = vmatpush1.msra.mxu0 0.0
    %1131 = vmatprep.subr.mxu0 0.0
    %1132 = vmatpush1.msra.mxu0 0.0
    %1133 = vmatprep.subr.mxu0 0.0
    %1134 = vmatpush1.msra.mxu0 0.0
    %1135 = vmatprep.subr.mxu0 0.0
    %1136 = vmatpush1.msra.mxu0 0.0
    %1137 = vmatprep.subr.mxu0 0.0
    %1138 = vmatpush1.msra.mxu0 0.0
    %1139 = vmatprep.subr.mxu0 0.0
    %1140 = vmatpush1.msra.mxu0 0.0
    %1141 = vmatprep.subr.mxu0 0.0
    %1142 = vmatpush1.msra.mxu0 0.0
    %1143 = vmatprep.subr.mxu0 0.0
    %1144 = vmatpush1.msra.mxu0 0.0
    %1145 = vmatprep.subr.mxu0 0.0
    %1146 = vmatpush1.msra.mxu0 0.0
    %1147 = vmatprep.subr.mxu0 0.0
    %1148 = vmatpush1.msra.mxu0 0.0
    %1149 = vmatprep.subr.mxu0 0.0
    %1150 = vmatpush1.msra.mxu0 0.0
    %1151 = vmatprep.subr.mxu0 0.0
    %1152 = vmatpush1.msra.mxu0 0.0
    %1153 = vmatprep.subr.mxu0 0.0
    %1154 = vmatpush1.msra.mxu0 0.0
    %1155 = vmatprep.subr.mxu0 0.0
    %1156 = vmatpush1.msra.mxu0 0.0
    %1157 = vmatprep.subr.mxu0 0.0
    %1158 = vmatpush1.msra.mxu0 0.0
    %1159 = vmatprep.subr.mxu0 0.0
    %1160 = vmatpush1.msra.mxu0 0.0
    %1161 = vmatprep.subr.mxu0 0.0
    %1162 = vmatpush1.msra.mxu0 0.0
    %1163 = vmatprep.subr.mxu0 0.0
    %1164 = vmatpush1.msra.mxu0 0.0
    %1165 = vmatprep.subr.mxu0 0.0
    %1166 = vmatpush1.msra.mxu0 0.0
    %1167 = vmatprep.subr.mxu0 0.0
    %1168 = vmatpush1.msra.mxu0 0.0
    %1169 = vmatprep.subr.mxu0 0.0
    %1170 = vmatpush1.msra.mxu0 0.0
    %1171 = vmatprep.subr.mxu0 0.0
    %1172 = vmatpush1.msra.mxu0 0.0
    %1173 = vmatprep.mubr.f32.mxu0 0.0
    %1174 = vmatmul.mubr.f32.gmra.mrb[0].mxu0 %v299
    %v1175 = vpop.f32.mrb[0].mxu0
    %v1176 = vadd.f32 0.0, %v1175
    %v1177 = vpop.f32.mrb[0].mxu0
    %1178 = vmatprep.mubr.f32.mxu0 0.0
    %1179 = vmatmul.mubr.f32.gmra.mrb[0].mxu0 %v302
    %v1180 = vpop.f32.mrb[0].mxu0
    %v1181 = vadd.f32 0.0, %v1180
    %v1182 = vpop.f32.mrb[0].mxu0
    %1183 = vmatprep.mubr.f32.mxu0 0.0
    %1184 = vmatmul.mubr.f32.gmra.mrb[0].mxu0 %v305
    %v1185 = vpop.f32.mrb[0].mxu0
    %v1186 = vadd.f32 0.0, %v1185
    %v1187 = vpop.f32.mrb[0].mxu0
    %1188 = vmatprep.mubr.f32.mxu0 0.0
    %1189 = vmatmul.mubr.f32.gmra.mrb[0].mxu0 %v308
    %v1190 = vpop.f32.mrb[0].mxu0
    %v1191 = vadd.f32 0.0, %v1190
    %v1192 = vpop.f32.mrb[0].mxu0
    %1193 = vmatprep.mubr.f32.mxu0 0.0
    %1194 = vmatmul.mubr.f32.gmra.mrb[0].mxu0 %v311
    %v1195 = vpop.f32.mrb[0].mxu0
    %v1196 = vadd.f32 0.0, %v1195
    %v1197 = vpop.f32.mrb[0].mxu0
    %1198 = vdwg.mxu0
    %1199 = vmatprep.subr.mxu0 0.0
    %1200 = vmatpush1.msra.mxu0 %v1093
    %1201 = vmatprep.subr.mxu0 0.0
    %1202 = vmatpush1.msra.mxu0 %v1098
    %1203 = vmatprep.subr.mxu0 0.0
    %1204 = vmatpush1.msra.mxu0 0.0
    %1205 = vmatprep.subr.mxu0 0.0
    %1206 = vmatpush1.msra.mxu0 0.0
    %1207 = vmatprep.subr.mxu0 0.0
    %1208 = vmatpush1.msra.mxu0 0.0
    %1209 = vmatprep.subr.mxu0 0.0
    %1210 = vmatpush1.msra.mxu0 0.0
    %1211 = vmatprep.subr.mxu0 0.0
    %1212 = vmatpush1.msra.mxu0 0.0
    %1213 = vmatprep.subr.mxu0 0.0
    %1214 = vmatpush1.msra.mxu0 0.0
    %1215 = vmatprep.subr.mxu0 0.0
    %1216 = vmatpush1.msra.mxu0 0.0
    %1217 = vmatprep.subr.mxu0 0.0
    %1218 = vmatpush1.msra.mxu0 0.0
    %1219 = vmatprep.subr.mxu0 0.0
    %1220 = vmatpush1.msra.mxu0 0.0
    %1221 = vmatprep.subr.mxu0 0.0
    %1222 = vmatpush1.msra.mxu0 0.0
    %1223 = vmatprep.subr.mxu0 0.0
    %1224 = vmatpush1.msra.mxu0 0.0
    %1225 = vmatprep.subr.mxu0 0.0
    %1226 = vmatpush1.msra.mxu0 0.0
    %1227 = vmatprep.subr.mxu0 0.0
    %1228 = vmatpush1.msra.mxu0 0.0
    %1229 = vmatprep.subr.mxu0 0.0
    %1230 = vmatpush1.msra.mxu0 0.0
    %1231 = vmatprep.subr.mxu0 0.0
    %1232 = vmatpush1.msra.mxu0 0.0
    %1233 = vmatprep.subr.mxu0 0.0
    %1234 = vmatpush1.msra.mxu0 0.0
    %1235 = vmatprep.subr.mxu0 0.0
    %1236 = vmatpush1.msra.mxu0 0.0
    %1237 = vmatprep.subr.mxu0 0.0
    %1238 = vmatpush1.msra.mxu0 0.0
    %1239 = vmatprep.subr.mxu0 0.0
    %1240 = vmatpush1.msra.mxu0 0.0
    %1241 = vmatprep.subr.mxu0 0.0
    %1242 = vmatpush1.msra.mxu0 0.0
    %1243 = vmatprep.subr.mxu0 0.0
    %1244 = vmatpush1.msra.mxu0 0.0
    %1245 = vmatprep.subr.mxu0 0.0
    %1246 = vmatpush1.msra.mxu0 0.0
    %1247 = vmatprep.subr.mxu0 0.0
    %1248 = vmatpush1.msra.mxu0 0.0
    %1249 = vmatprep.subr.mxu0 0.0
    %1250 = vmatpush1.msra.mxu0 0.0
    %1251 = vmatprep.subr.mxu0 0.0
    %1252 = vmatpush1.msra.mxu0 0.0
    %1253 = vmatprep.subr.mxu0 0.0
    %1254 = vmatpush1.msra.mxu0 0.0
    %1255 = vmatprep.subr.mxu0 0.0
    %1256 = vmatpush1.msra.mxu0 0.0
    %1257 = vmatprep.subr.mxu0 0.0
    %1258 = vmatpush1.msra.mxu0 0.0
    %1259 = vmatprep.subr.mxu0 0.0
    %1260 = vmatpush1.msra.mxu0 0.0
    %1261 = vmatprep.subr.mxu0 0.0
    %1262 = vmatpush1.msra.mxu0 0.0
    %1263 = vmatprep.mubr.f32.mxu0 0.0
    %1264 = vmatmul.mubr.f32.gmra.mrb[0].mxu0 %v404
    %v1265 = vpop.f32.mrb[0].mxu0
    %v1266 = vadd.f32 %v1176, %v1265
    %v1267 = vpop.f32.mrb[0].mxu0
    %1268 = vmatprep.mubr.f32.mxu0 0.0
    %1269 = vmatmul.mubr.f32.gmra.mrb[0].mxu0 %v407
    %v1270 = vpop.f32.mrb[0].mxu0
    %v1271 = vadd.f32 %v1181, %v1270
    %v1272 = vpop.f32.mrb[0].mxu0
    %1273 = vmatprep.mubr.f32.mxu0 0.0
    %1274 = vmatmul.mubr.f32.gmra.mrb[0].mxu0 %v410
    %v1275 = vpop.f32.mrb[0].mxu0
    %v1276 = vadd.f32 %v1186, %v1275
    %v1277 = vpop.f32.mrb[0].mxu0
    %1278 = vmatprep.mubr.f32.mxu0 0.0
    %1279 = vmatmul.mubr.f32.gmra.mrb[0].mxu0 %v413
    %v1280 = vpop.f32.mrb[0].mxu0
    %v1281 = vadd.f32 %v1191, %v1280
    %v1282 = vpop.f32.mrb[0].mxu0
    %1283 = vmatprep.mubr.f32.mxu0 0.0
    %1284 = vmatmul.mubr.f32.gmra.mrb[0].mxu0 %v416
    %v1285 = vpop.f32.mrb[0].mxu0
    %v1286 = vadd.f32 %v1196, %v1285
    %v1287 = vpop.f32.mrb[0].mxu0
    %1288 = vdwg.mxu0
    %v1289 = vstv %s946
    %v1290 = vadd.f32 %v1266, %v1289
    %v1291 = vadd.f32 %v1271, %v1289
    %v1292 = vadd.f32 %v1276, %v1289
    %v1293 = vadd.f32 %v1281, %v1289
    %v1294 = vadd.f32 %v1286, %v1289
    %vm1295 = vcmp.gt.f32.partialorder %v1290, 0.0
    %vm1296 = vcmp.gt.f32.partialorder %v1291, 0.0
    %vm1297 = vcmp.gt.f32.partialorder %v1292, 0.0
    %vm1298 = vcmp.gt.f32.partialorder %v1293, 0.0
    %vm1299 = vcmp.gt.f32.partialorder %v1294, 0.0
    %v1300 = vmul.f32 %v1290, 0.2
    %v1301 = vmul.f32 %v1291, 0.2
    %v1302 = vmul.f32 %v1292, 0.2
    %v1303 = vmul.f32 %v1293, 0.2
    %v1304 = vmul.f32 %v1294, 0.2
    %v1305 = vsel %vm1295, %v1290, %v1300
    %v1306 = vsel %vm1296, %v1291, %v1301
    %v1307 = vsel %vm1297, %v1292, %v1302
    %v1308 = vsel %vm1298, %v1293, %v1303
    %v1309 = vsel %vm1299, %v1294, %v1304
    %v1310 = vsel %vm109, %v1305, -1e+30
    %v1311 = vsel %vm110, %v1306, -1e+30
    %v1312 = vsel %vm111, %v1307, -1e+30
    %v1313 = vsel %vm112, %v1308, -1e+30
    %v1314 = vsel %vm113, %v1309, -1e+30
    %1316 = vset.pattern.permute.xlu0 0
    %1317 = vperm.xlu0 %1316, %v1310
    %v1318 = vpop.permute.xlu0 %1317
    %1321 = vset.pattern.permute.xlu0 0
    %1322 = vperm.xlu0 %1321, %v1311
    %v1323 = vpop.permute.xlu0 %1322
    %1326 = vset.pattern.permute.xlu0 0
    %1327 = vperm.xlu0 %1326, %v1312
    %v1328 = vpop.permute.xlu0 %1327
    %1331 = vset.pattern.permute.xlu0 0
    %1332 = vperm.xlu0 %1331, %v1313
    %v1333 = vpop.permute.xlu0 %1332
    %1336 = vset.pattern.permute.xlu0 0
    %1337 = vperm.xlu0 %1336, %v1314
    %v1338 = vpop.permute.xlu0 %1337
    %v1340 = vsel %vm534, %v1318, -1e+30
    %v1341 = vsel %vm535, %v1323, -1e+30
    %v1342 = vsel %vm536, %v1328, -1e+30
    %v1343 = vsel %vm537, %v1333, -1e+30
    %v1344 = vsel %vm538, %v1338, -1e+30
    %v1345 = vsel %vm297, %v1340, -inf
    %v1346 = vsel %vm297, %v1341, -inf
    %v1347 = vsel %vm297, %v1342, -inf
    %v1348 = vsel %vm297, %v1343, -inf
    %v1349 = vsel %vm297, %v1344, -inf
    %v1350 = vmax.f32 %v1345, %v1349
    %v1351 = vmax.f32 %v1350, %v1346
    %v1352 = vmax.f32 %v1347, %v1348
    %v1353 = vmax.f32 %v1351, %v1352
    %v1354 = vrot.slane %v1353, 4
    %v1355 = vmax.f32 %v1353, %v1354
    %v1356 = vrot.slane %v1355, 2
    %v1357 = vmax.f32 %v1355, %v1356
    %v1358 = vrot.slane %v1357, 1
    %v1359 = vmax.f32 %v1357, %v1358
    %v1360 = vmul.f32 %v104, %v1359
    %v1361 = vmul.f32 %v105, %v1359
    %v1362 = vmul.f32 %v106, %v1359
    %v1363 = vmul.f32 %v107, %v1359
    %v1364 = vmul.f32 %v108, %v1359
    %v1365 = vsel %vm297, %v1360, 0.0
    %1366 = vadd.xlane.f32.xlu0 %v1365
    %v1367 = vpop.xlane.xlu0 %1366
    %v1368 = vsel %vm297, %v1361, 0.0
    %1369 = vadd.xlane.f32.xlu0 %v1368
    %v1370 = vpop.xlane.xlu0 %1369
    %v1371 = vsel %vm297, %v1362, 0.0
    %1372 = vadd.xlane.f32.xlu0 %v1371
    %v1373 = vpop.xlane.xlu0 %1372
    %v1374 = vsel %vm297, %v1363, 0.0
    %1375 = vadd.xlane.f32.xlu0 %v1374
    %v1376 = vpop.xlane.xlu0 %1375
    %v1377 = vsel %vm297, %v1364, 0.0
    %1378 = vadd.xlane.f32.xlu0 %v1377
    %v1379 = vpop.xlane.xlu0 %1378
    %v1380 = vsub.f32 %v1310, %v1367
    %v1381 = vsub.f32 %v1311, %v1370
    %v1382 = vsub.f32 %v1312, %v1373
    %v1383 = vsub.f32 %v1313, %v1376
    %v1384 = vsub.f32 %v1314, %v1379
    %v1385 = vmul.f32 %v1380, 1.442695
    %v1386 = vpow.pop %v1385
    %v1387 = vmul.f32 %v1381, 1.442695
    %v1388 = vpow.pop %v1387
    %v1389 = vmul.f32 %v1382, 1.442695
    %v1390 = vpow.pop %v1389
    %v1391 = vmul.f32 %v1383, 1.442695
    %v1392 = vpow.pop %v1391
    %v1393 = vmul.f32 %v1384, 1.442695
    %v1394 = vpow.pop %v1393
    %1396 = vset.pattern.permute.xlu0 0
    %1397 = vperm.xlu0 %1396, %v1386
    %v1398 = vpop.permute.xlu0 %1397
    %1401 = vset.pattern.permute.xlu0 0
    %1402 = vperm.xlu0 %1401, %v1388
    %v1403 = vpop.permute.xlu0 %1402
    %1406 = vset.pattern.permute.xlu0 0
    %1407 = vperm.xlu0 %1406, %v1390
    %v1408 = vpop.permute.xlu0 %1407
    %1411 = vset.pattern.permute.xlu0 0
    %1412 = vperm.xlu0 %1411, %v1392
    %v1413 = vpop.permute.xlu0 %1412
    %1416 = vset.pattern.permute.xlu0 0
    %1417 = vperm.xlu0 %1416, %v1394
    %v1418 = vpop.permute.xlu0 %1417
    %v1420 = vmul.f32 %v104, %v1398
    %v1421 = vmul.f32 %v105, %v1403
    %v1422 = vmul.f32 %v106, %v1408
    %v1423 = vmul.f32 %v107, %v1413
    %v1424 = vmul.f32 %v108, %v1418
    %v1425 = vsel %vm297, %v1420, 0.0
    %v1426 = vsel %vm297, %v1421, 0.0
    %v1427 = vadd.f32 %v1425, %v1426
    %v1428 = vsel %vm297, %v1422, 0.0
    %v1429 = vadd.f32 %v1427, %v1428
    %v1430 = vsel %vm297, %v1423, 0.0
    %v1431 = vadd.f32 %v1429, %v1430
    %v1432 = vsel %vm297, %v1424, 0.0
    %v1433 = vadd.f32 %v1431, %v1432
    %v1434 = vrot.slane %v1433, 4
    %v1435 = vadd.f32 %v1433, %v1434
    %v1436 = vrot.slane %v1435, 2
    %v1437 = vadd.f32 %v1435, %v1436
    %v1438 = vrot.slane %v1437, 1
    %v1439 = vadd.f32 %v1437, %v1438
    %vm1440 = vcmp.gt.f32.partialorder %v1439, 0.0
    %v1441 = vrcp.pop %v1439
    %v1442 = vsel %vm1440, %v1441, 0.0
    %v1443 = vmul.f32 %v104, %v1442
    %v1444 = vmul.f32 %v105, %v1442
    %v1445 = vmul.f32 %v106, %v1442
    %v1446 = vmul.f32 %v107, %v1442
    %v1447 = vmul.f32 %v108, %v1442
    %v1448 = vsel %vm297, %v1443, 0.0
    %1449 = vadd.xlane.f32.xlu0 %v1448
    %v1450 = vpop.xlane.xlu0 %1449
    %v1451 = vsel %vm297, %v1444, 0.0
    %1452 = vadd.xlane.f32.xlu0 %v1451
    %v1453 = vpop.xlane.xlu0 %1452
    %v1454 = vsel %vm297, %v1445, 0.0
    %1455 = vadd.xlane.f32.xlu0 %v1454
    %v1456 = vpop.xlane.xlu0 %1455
    %v1457 = vsel %vm297, %v1446, 0.0
    %1458 = vadd.xlane.f32.xlu0 %v1457
    %v1459 = vpop.xlane.xlu0 %1458
    %v1460 = vsel %vm297, %v1447, 0.0
    %1461 = vadd.xlane.f32.xlu0 %v1460
    %v1462 = vpop.xlane.xlu0 %1461
    %v1463 = vmul.f32 %v1386, %v1450
    %v1464 = vmul.f32 %v1388, %v1453
    %v1465 = vmul.f32 %v1390, %v1456
    %v1466 = vmul.f32 %v1392, %v1459
    %v1467 = vmul.f32 %v1394, %v1462
    %1468 = vmatprep.subr.mxu0 0.0
    %1469 = vmatpush1.msra.mxu0 %v1018
    %1470 = vmatprep.subr.mxu0 0.0
    %1471 = vmatpush1.msra.mxu0 %v1023
    %1472 = vmatprep.subr.mxu0 0.0
    %1473 = vmatpush1.msra.mxu0 0.0
    %1474 = vmatprep.subr.mxu0 0.0
    %1475 = vmatpush1.msra.mxu0 0.0
    %1476 = vmatprep.subr.mxu0 0.0
    %1477 = vmatpush1.msra.mxu0 0.0
    %1478 = vmatprep.subr.mxu0 0.0
    %1479 = vmatpush1.msra.mxu0 0.0
    %1480 = vmatprep.subr.mxu0 0.0
    %1481 = vmatpush1.msra.mxu0 0.0
    %1482 = vmatprep.subr.mxu0 0.0
    %1483 = vmatpush1.msra.mxu0 0.0
    %1484 = vmatprep.subr.mxu0 0.0
    %1485 = vmatpush1.msra.mxu0 0.0
    %1486 = vmatprep.subr.mxu0 0.0
    %1487 = vmatpush1.msra.mxu0 0.0
    %1488 = vmatprep.subr.mxu0 0.0
    %1489 = vmatpush1.msra.mxu0 0.0
    %1490 = vmatprep.subr.mxu0 0.0
    %1491 = vmatpush1.msra.mxu0 0.0
    %1492 = vmatprep.subr.mxu0 0.0
    %1493 = vmatpush1.msra.mxu0 0.0
    %1494 = vmatprep.subr.mxu0 0.0
    %1495 = vmatpush1.msra.mxu0 0.0
    %1496 = vmatprep.subr.mxu0 0.0
    %1497 = vmatpush1.msra.mxu0 0.0
    %1498 = vmatprep.subr.mxu0 0.0
    %1499 = vmatpush1.msra.mxu0 0.0
    %1500 = vmatprep.subr.mxu0 0.0
    %1501 = vmatpush1.msra.mxu0 0.0
    %1502 = vmatprep.subr.mxu0 0.0
    %1503 = vmatpush1.msra.mxu0 0.0
    %1504 = vmatprep.subr.mxu0 0.0
    %1505 = vmatpush1.msra.mxu0 0.0
    %1506 = vmatprep.subr.mxu0 0.0
    %1507 = vmatpush1.msra.mxu0 0.0
    %1508 = vmatprep.subr.mxu0 0.0
    %1509 = vmatpush1.msra.mxu0 0.0
    %1510 = vmatprep.subr.mxu0 0.0
    %1511 = vmatpush1.msra.mxu0 0.0
    %1512 = vmatprep.subr.mxu0 0.0
    %1513 = vmatpush1.msra.mxu0 0.0
    %1514 = vmatprep.subr.mxu0 0.0
    %1515 = vmatpush1.msra.mxu0 0.0
    %1516 = vmatprep.subr.mxu0 0.0
    %1517 = vmatpush1.msra.mxu0 0.0
    %1518 = vmatprep.subr.mxu0 0.0
    %1519 = vmatpush1.msra.mxu0 0.0
    %1520 = vmatprep.subr.mxu0 0.0
    %1521 = vmatpush1.msra.mxu0 0.0
    %1522 = vmatprep.subr.mxu0 0.0
    %1523 = vmatpush1.msra.mxu0 0.0
    %1524 = vmatprep.subr.mxu0 0.0
    %1525 = vmatpush1.msra.mxu0 0.0
    %1526 = vmatprep.subr.mxu0 0.0
    %1527 = vmatpush1.msra.mxu0 0.0
    %1528 = vmatprep.subr.mxu0 0.0
    %1529 = vmatpush1.msra.mxu0 0.0
    %1530 = vmatprep.subr.mxu0 0.0
    %1531 = vmatpush1.msra.mxu0 0.0
    %1532 = vmatprep.mubr.f32.mxu0 0.0
    %1533 = vmatmul.mubr.f32.gmra.mrb[0].mxu0 %v404
    %v1534 = vpop.f32.mrb[0].mxu0
    %v1535 = vadd.f32 0.0, %v1534
    %v1536 = vpop.f32.mrb[0].mxu0
    %1537 = vmatprep.mubr.f32.mxu0 0.0
    %1538 = vmatmul.mubr.f32.gmra.mrb[0].mxu0 %v407
    %v1539 = vpop.f32.mrb[0].mxu0
    %v1540 = vadd.f32 0.0, %v1539
    %v1541 = vpop.f32.mrb[0].mxu0
    %1542 = vmatprep.mubr.f32.mxu0 0.0
    %1543 = vmatmul.mubr.f32.gmra.mrb[0].mxu0 %v410
    %v1544 = vpop.f32.mrb[0].mxu0
    %v1545 = vadd.f32 0.0, %v1544
    %v1546 = vpop.f32.mrb[0].mxu0
    %1547 = vmatprep.mubr.f32.mxu0 0.0
    %1548 = vmatmul.mubr.f32.gmra.mrb[0].mxu0 %v413
    %v1549 = vpop.f32.mrb[0].mxu0
    %v1550 = vadd.f32 0.0, %v1549
    %v1551 = vpop.f32.mrb[0].mxu0
    %1552 = vmatprep.mubr.f32.mxu0 0.0
    %1553 = vmatmul.mubr.f32.gmra.mrb[0].mxu0 %v416
    %v1554 = vpop.f32.mrb[0].mxu0
    %v1555 = vadd.f32 0.0, %v1554
    %v1556 = vpop.f32.mrb[0].mxu0
    %1557 = vdwg.mxu0
    %1559 = vset.pattern.permute.xlu0 0
    %1560 = vperm.xlu0 %1559, %v1463
    %v1561 = vpop.permute.xlu0 %1560
    %1564 = vset.pattern.permute.xlu0 0
    %1565 = vperm.xlu0 %1564, %v1464
    %v1566 = vpop.permute.xlu0 %1565
    %1569 = vset.pattern.permute.xlu0 0
    %1570 = vperm.xlu0 %1569, %v1465
    %v1571 = vpop.permute.xlu0 %1570
    %1574 = vset.pattern.permute.xlu0 0
    %1575 = vperm.xlu0 %1574, %v1466
    %v1576 = vpop.permute.xlu0 %1575
    %1579 = vset.pattern.permute.xlu0 0
    %1580 = vperm.xlu0 %1579, %v1467
    %v1581 = vpop.permute.xlu0 %1580
    %v1583 = vmul.f32 %v1561, %v1535
    %v1584 = vmul.f32 %v1566, %v1540
    %v1585 = vmul.f32 %v1571, %v1545
    %v1586 = vmul.f32 %v1576, %v1550
    %v1587 = vmul.f32 %v1581, %v1555
    %1588 = vmatprep.subr.mxu0 0.0
    %1589 = vmatpush1.msra.mxu0 %v1583
    %1590 = vmatprep.subr.mxu0 0.0
    %1591 = vmatpush1.msra.mxu0 %v1584
    %1592 = vmatprep.subr.mxu0 0.0
    %1593 = vmatpush1.msra.mxu0 %v1585
    %1594 = vmatprep.subr.mxu0 0.0
    %1595 = vmatpush1.msra.mxu0 %v1586
    %1596 = vmatprep.subr.mxu0 0.0
    %1597 = vmatpush1.msra.mxu0 %v1587
    %1598 = vmatprep.subr.mxu0 0.0
    %1599 = vmatpush1.msra.mxu0 0.0
    %1600 = vmatprep.subr.mxu0 0.0
    %1601 = vmatpush1.msra.mxu0 0.0
    %1602 = vmatprep.subr.mxu0 0.0
    %1603 = vmatpush1.msra.mxu0 0.0
    %1604 = vmatprep.subr.mxu0 0.0
    %1605 = vmatpush1.msra.mxu0 0.0
    %1606 = vmatprep.subr.mxu0 0.0
    %1607 = vmatpush1.msra.mxu0 0.0
    %1608 = vmatprep.subr.mxu0 0.0
    %1609 = vmatpush1.msra.mxu0 0.0
    %1610 = vmatprep.subr.mxu0 0.0
    %1611 = vmatpush1.msra.mxu0 0.0
    %1612 = vmatprep.subr.mxu0 0.0
    %1613 = vmatpush1.msra.mxu0 0.0
    %1614 = vmatprep.subr.mxu0 0.0
    %1615 = vmatpush1.msra.mxu0 0.0
    %1616 = vmatprep.subr.mxu0 0.0
    %1617 = vmatpush1.msra.mxu0 0.0
    %1618 = vmatprep.subr.mxu0 0.0
    %1619 = vmatpush1.msra.mxu0 0.0
    %1620 = vmatprep.subr.mxu0 0.0
    %1621 = vmatpush1.msra.mxu0 0.0
    %1622 = vmatprep.subr.mxu0 0.0
    %1623 = vmatpush1.msra.mxu0 0.0
    %1624 = vmatprep.subr.mxu0 0.0
    %1625 = vmatpush1.msra.mxu0 0.0
    %1626 = vmatprep.subr.mxu0 0.0
    %1627 = vmatpush1.msra.mxu0 0.0
    %1628 = vmatprep.subr.mxu0 0.0
    %1629 = vmatpush1.msra.mxu0 0.0
    %1630 = vmatprep.subr.mxu0 0.0
    %1631 = vmatpush1.msra.mxu0 0.0
    %1632 = vmatprep.subr.mxu0 0.0
    %1633 = vmatpush1.msra.mxu0 0.0
    %1634 = vmatprep.subr.mxu0 0.0
    %1635 = vmatpush1.msra.mxu0 0.0
    %1636 = vmatprep.subr.mxu0 0.0
    %1637 = vmatpush1.msra.mxu0 0.0
    %1638 = vmatprep.subr.mxu0 0.0
    %1639 = vmatpush1.msra.mxu0 0.0
    %1640 = vmatprep.subr.mxu0 0.0
    %1641 = vmatpush1.msra.mxu0 0.0
    %1642 = vmatprep.subr.mxu0 0.0
    %1643 = vmatpush1.msra.mxu0 0.0
    %1644 = vmatprep.subr.mxu0 0.0
    %1645 = vmatpush1.msra.mxu0 0.0
    %1646 = vmatprep.subr.mxu0 0.0
    %1647 = vmatpush1.msra.mxu0 0.0
    %1648 = vmatprep.subr.mxu0 0.0
    %1649 = vmatpush1.msra.mxu0 0.0
    %1650 = vmatprep.subr.mxu0 0.0
    %1651 = vmatpush1.msra.mxu0 0.0
    %1652 = vmatprep.mubr.f32.mxu0 0.0
    %1653 = vmatmul.mubr.f32.gmra.mrb[0].mxu0 %v846
    %v1654 = vpop.f32.mrb[0].mxu0
    %v1655 = vadd.f32 0.0, %v1654
    %v1656 = vpop.f32.mrb[0].mxu0
    %1657 = vmatprep.mubr.f32.mxu0 0.0
    %1658 = vmatmul.mubr.f32.gmra.mrb[0].mxu0 %v849
    %v1659 = vpop.f32.mrb[0].mxu0
    %v1660 = vadd.f32 0.0, %v1659
    %v1661 = vpop.f32.mrb[0].mxu0
    %1662 = vdwg.mxu0
    %s1663 = scalar_lea.vmem %s1, 256
    %v1664 = vld [vmem:[%s1663] sm:$0xff]
    %v1665 = vld [vmem:[%s1663 + $0x8] sm:$0xff]
    %v1666 = vld [vmem:[%s1663 + $0x10] sm:$0xff]
    %v1667 = vld [vmem:[%s1663 + $0x18] sm:$0xff]
    %v1668 = vld [vmem:[%s1663 + $0x20] sm:$0xff]
    %v1669 = vld [vmem:[%s1663 + $0x28] sm:$0xff]
    %v1670 = vld [vmem:[%s1663 + $0x30] sm:$0xff]
    %v1671 = vld [vmem:[%s1663 + $0x38] sm:$0xff]
    %v1672 = vld [vmem:[%s1663 + $0x40] sm:$0xff]
    %v1673 = vld [vmem:[%s1663 + $0x48] sm:$0xff]
    %v1674 = vld [vmem:[%s1663 + $0x50] sm:$0xff]
    %v1675 = vld [vmem:[%s1663 + $0x58] sm:$0xff]
    %v1676 = vld [vmem:[%s1663 + $0x60] sm:$0xff]
    %v1677 = vld [vmem:[%s1663 + $0x68] sm:$0xff]
    %v1678 = vld [vmem:[%s1663 + $0x70] sm:$0xff]
    %v1679 = vld [vmem:[%s1663 + $0x78] sm:$0xff]
    %s1680 = scalar_lea.vmem %s2, 16
    %v1681 = vld [vmem:[%s1680] sm:$0x1]
    %v1682 = vld [vmem:[%s1680 + $0x1] sm:$0x3]
    %s1683 = sld [smem:[#allocation2 + $0x2]]
    %v1684 = vlaneseq
    %v1685 = vshrl.u32 %v1684, 7
    %v1686 = vsub.s32 0, %v1685
    %v1687 = vrot.slane %v1681, %v1686
    %1688 = vmatprep.subr.mxu0 0.0
    %1689 = vmatpush1.msra.mxu0 %v1664
    %1690 = vmatprep.subr.mxu0 0.0
    %1691 = vmatpush1.msra.mxu0 %v1665
    %1692 = vmatprep.subr.mxu0 0.0
    %1693 = vmatpush1.msra.mxu0 %v1666
    %1694 = vmatprep.subr.mxu0 0.0
    %1695 = vmatpush1.msra.mxu0 %v1667
    %1696 = vmatprep.subr.mxu0 0.0
    %1697 = vmatpush1.msra.mxu0 %v1668
    %1698 = vmatprep.subr.mxu0 0.0
    %1699 = vmatpush1.msra.mxu0 %v1669
    %1700 = vmatprep.subr.mxu0 0.0
    %1701 = vmatpush1.msra.mxu0 %v1670
    %1702 = vmatprep.subr.mxu0 0.0
    %1703 = vmatpush1.msra.mxu0 %v1671
    %1704 = vmatprep.subr.mxu0 0.0
    %1705 = vmatpush1.msra.mxu0 %v1672
    %1706 = vmatprep.subr.mxu0 0.0
    %1707 = vmatpush1.msra.mxu0 %v1673
    %1708 = vmatprep.subr.mxu0 0.0
    %1709 = vmatpush1.msra.mxu0 %v1674
    %1710 = vmatprep.subr.mxu0 0.0
    %1711 = vmatpush1.msra.mxu0 %v1675
    %1712 = vmatprep.subr.mxu0 0.0
    %1713 = vmatpush1.msra.mxu0 %v1676
    %1714 = vmatprep.subr.mxu0 0.0
    %1715 = vmatpush1.msra.mxu0 %v1677
    %1716 = vmatprep.subr.mxu0 0.0
    %1717 = vmatpush1.msra.mxu0 %v1678
    %1718 = vmatprep.subr.mxu0 0.0
    %1719 = vmatpush1.msra.mxu0 %v1679
    %1720 = vmatprep.subr.mxu0 0.0
    %1721 = vmatpush1.msra.mxu0 0.0
    %1722 = vmatprep.subr.mxu0 0.0
    %1723 = vmatpush1.msra.mxu0 0.0
    %1724 = vmatprep.subr.mxu0 0.0
    %1725 = vmatpush1.msra.mxu0 0.0
    %1726 = vmatprep.subr.mxu0 0.0
    %1727 = vmatpush1.msra.mxu0 0.0
    %1728 = vmatprep.subr.mxu0 0.0
    %1729 = vmatpush1.msra.mxu0 0.0
    %1730 = vmatprep.subr.mxu0 0.0
    %1731 = vmatpush1.msra.mxu0 0.0
    %1732 = vmatprep.subr.mxu0 0.0
    %1733 = vmatpush1.msra.mxu0 0.0
    %1734 = vmatprep.subr.mxu0 0.0
    %1735 = vmatpush1.msra.mxu0 0.0
    %1736 = vmatprep.subr.mxu0 0.0
    %1737 = vmatpush1.msra.mxu0 0.0
    %1738 = vmatprep.subr.mxu0 0.0
    %1739 = vmatpush1.msra.mxu0 0.0
    %1740 = vmatprep.subr.mxu0 0.0
    %1741 = vmatpush1.msra.mxu0 0.0
    %1742 = vmatprep.subr.mxu0 0.0
    %1743 = vmatpush1.msra.mxu0 0.0
    %1744 = vmatprep.subr.mxu0 0.0
    %1745 = vmatpush1.msra.mxu0 0.0
    %1746 = vmatprep.subr.mxu0 0.0
    %1747 = vmatpush1.msra.mxu0 0.0
    %1748 = vmatprep.subr.mxu0 0.0
    %1749 = vmatpush1.msra.mxu0 0.0
    %1750 = vmatprep.subr.mxu0 0.0
    %1751 = vmatpush1.msra.mxu0 0.0
    %1752 = vmatprep.mubr.f32.mxu0 0.0
    %1753 = vmatmul.mubr.f32.gmra.mrb[0].mxu0 %v1655
    %v1754 = vpop.f32.mrb[0].mxu0
    %v1755 = vadd.f32 %v1687, %v1754
    %v1756 = vpop.f32.mrb[0].mxu0
    %1757 = vmatprep.mubr.f32.mxu0 0.0
    %1758 = vmatmul.mubr.f32.gmra.mrb[0].mxu0 %v1660
    %v1759 = vpop.f32.mrb[0].mxu0
    %v1760 = vadd.f32 %v1687, %v1759
    %v1761 = vpop.f32.mrb[0].mxu0
    %1762 = vdwg.mxu0
    %1763 = vmatprep.subr.mxu0 0.0
    %1764 = vmatpush1.xpose.msra.mxu0 %v1682
    %1765 = vmatprep.subr.mxu0 0.0
    %1766 = vmatpush1.xpose.msra.mxu0 0.0
    %1767 = vmatprep.subr.mxu0 0.0
    %1768 = vmatpush1.xpose.msra.mxu0 0.0
    %1769 = vmatprep.subr.mxu0 0.0
    %1770 = vmatpush1.xpose.msra.mxu0 0.0
    %1771 = vmatprep.subr.mxu0 0.0
    %1772 = vmatpush1.xpose.msra.mxu0 0.0
    %1773 = vmatprep.subr.mxu0 0.0
    %1774 = vmatpush1.xpose.msra.mxu0 0.0
    %1775 = vmatprep.subr.mxu0 0.0
    %1776 = vmatpush1.xpose.msra.mxu0 0.0
    %1777 = vmatprep.subr.mxu0 0.0
    %1778 = vmatpush1.xpose.msra.mxu0 0.0
    %1779 = vmatprep.subr.mxu0 0.0
    %1780 = vmatpush1.xpose.msra.mxu0 0.0
    %1781 = vmatprep.subr.mxu0 0.0
    %1782 = vmatpush1.xpose.msra.mxu0 0.0
    %1783 = vmatprep.subr.mxu0 0.0
    %1784 = vmatpush1.xpose.msra.mxu0 0.0
    %1785 = vmatprep.subr.mxu0 0.0
    %1786 = vmatpush1.xpose.msra.mxu0 0.0
    %1787 = vmatprep.subr.mxu0 0.0
    %1788 = vmatpush1.xpose.msra.mxu0 0.0
    %1789 = vmatprep.subr.mxu0 0.0
    %1790 = vmatpush1.xpose.msra.mxu0 0.0
    %1791 = vmatprep.subr.mxu0 0.0
    %1792 = vmatpush1.xpose.msra.mxu0 0.0
    %1793 = vmatprep.subr.mxu0 0.0
    %1794 = vmatpush1.xpose.msra.mxu0 0.0
    %1795 = vmatprep.subr.mxu0 0.0
    %1796 = vmatpush1.xpose.msra.mxu0 0.0
    %1797 = vmatprep.subr.mxu0 0.0
    %1798 = vmatpush1.xpose.msra.mxu0 0.0
    %1799 = vmatprep.subr.mxu0 0.0
    %1800 = vmatpush1.xpose.msra.mxu0 0.0
    %1801 = vmatprep.subr.mxu0 0.0
    %1802 = vmatpush1.xpose.msra.mxu0 0.0
    %1803 = vmatprep.subr.mxu0 0.0
    %1804 = vmatpush1.xpose.msra.mxu0 0.0
    %1805 = vmatprep.subr.mxu0 0.0
    %1806 = vmatpush1.xpose.msra.mxu0 0.0
    %1807 = vmatprep.subr.mxu0 0.0
    %1808 = vmatpush1.xpose.msra.mxu0 0.0
    %1809 = vmatprep.subr.mxu0 0.0
    %1810 = vmatpush1.xpose.msra.mxu0 0.0
    %1811 = vmatprep.subr.mxu0 0.0
    %1812 = vmatpush1.xpose.msra.mxu0 0.0
    %1813 = vmatprep.subr.mxu0 0.0
    %1814 = vmatpush1.xpose.msra.mxu0 0.0
    %1815 = vmatprep.subr.mxu0 0.0
    %1816 = vmatpush1.xpose.msra.mxu0 0.0
    %1817 = vmatprep.subr.mxu0 0.0
    %1818 = vmatpush1.xpose.msra.mxu0 0.0
    %1819 = vmatprep.subr.mxu0 0.0
    %1820 = vmatpush1.xpose.msra.mxu0 0.0
    %1821 = vmatprep.subr.mxu0 0.0
    %1822 = vmatpush1.xpose.msra.mxu0 0.0
    %1823 = vmatprep.subr.mxu0 0.0
    %1824 = vmatpush1.xpose.msra.mxu0 0.0
    %1825 = vmatprep.subr.mxu0 0.0
    %1826 = vmatpush1.xpose.msra.mxu0 0.0
    %1827 = vmatprep.mubr.f32.mxu0 0.0
    %1828 = vmatmul.mubr.f32.gmra.mrb[0].mxu0 %v1755
    %v1829 = vpop.f32.mrb[0].mxu0
    %v1830 = vadd.f32 0.0, %v1829
    %v1831 = vpop.f32.mrb[0].mxu0
    %1832 = vmatprep.mubr.f32.mxu0 0.0
    %1833 = vmatmul.mubr.f32.gmra.mrb[0].mxu0 %v1760
    %v1834 = vpop.f32.mrb[0].mxu0
    %v1835 = vadd.f32 0.0, %v1834
    %v1836 = vpop.f32.mrb[0].mxu0
    %1837 = vdwg.mxu0
    %1840 = vrot.lane.b32.xlu0 %v1830, 127
    %v1841 = vpop.permute.xlu0 %1840
    %1842 = vrot.lane.b32.xlu0 %v1835, 127
    %v1843 = vpop.permute.xlu0 %1842
    %1846 = vmatprep.subr.mxu0 0.0
    %1847 = vmatpush1.msra.mxu0 %v1841
    %1848 = vmatprep.subr.mxu0 0.0
    %1849 = vmatpush1.msra.mxu0 %v1843
    %1850 = vmatprep.subr.mxu0 0.0
    %1851 = vmatpush1.msra.mxu0 0.0
    %1852 = vmatprep.subr.mxu0 0.0
    %1853 = vmatpush1.msra.mxu0 0.0
    %1854 = vmatprep.subr.mxu0 0.0
    %1855 = vmatpush1.msra.mxu0 0.0
    %1856 = vmatprep.subr.mxu0 0.0
    %1857 = vmatpush1.msra.mxu0 0.0
    %1858 = vmatprep.subr.mxu0 0.0
    %1859 = vmatpush1.msra.mxu0 0.0
    %1860 = vmatprep.subr.mxu0 0.0
    %1861 = vmatpush1.msra.mxu0 0.0
    %1862 = vmatprep.subr.mxu0 0.0
    %1863 = vmatpush1.msra.mxu0 0.0
    %1864 = vmatprep.subr.mxu0 0.0
    %1865 = vmatpush1.msra.mxu0 0.0
    %1866 = vmatprep.subr.mxu0 0.0
    %1867 = vmatpush1.msra.mxu0 0.0
    %1868 = vmatprep.subr.mxu0 0.0
    %1869 = vmatpush1.msra.mxu0 0.0
    %1870 = vmatprep.subr.mxu0 0.0
    %1871 = vmatpush1.msra.mxu0 0.0
    %1872 = vmatprep.subr.mxu0 0.0
    %1873 = vmatpush1.msra.mxu0 0.0
    %1874 = vmatprep.subr.mxu0 0.0
    %1875 = vmatpush1.msra.mxu0 0.0
    %1876 = vmatprep.subr.mxu0 0.0
    %1877 = vmatpush1.msra.mxu0 0.0
    %1878 = vmatprep.subr.mxu0 0.0
    %1879 = vmatpush1.msra.mxu0 0.0
    %1880 = vmatprep.subr.mxu0 0.0
    %1881 = vmatpush1.msra.mxu0 0.0
    %1882 = vmatprep.subr.mxu0 0.0
    %1883 = vmatpush1.msra.mxu0 0.0
    %1884 = vmatprep.subr.mxu0 0.0
    %1885 = vmatpush1.msra.mxu0 0.0
    %1886 = vmatprep.subr.mxu0 0.0
    %1887 = vmatpush1.msra.mxu0 0.0
    %1888 = vmatprep.subr.mxu0 0.0
    %1889 = vmatpush1.msra.mxu0 0.0
    %1890 = vmatprep.subr.mxu0 0.0
    %1891 = vmatpush1.msra.mxu0 0.0
    %1892 = vmatprep.subr.mxu0 0.0
    %1893 = vmatpush1.msra.mxu0 0.0
    %1894 = vmatprep.subr.mxu0 0.0
    %1895 = vmatpush1.msra.mxu0 0.0
    %1896 = vmatprep.subr.mxu0 0.0
    %1897 = vmatpush1.msra.mxu0 0.0
    %1898 = vmatprep.subr.mxu0 0.0
    %1899 = vmatpush1.msra.mxu0 0.0
    %1900 = vmatprep.subr.mxu0 0.0
    %1901 = vmatpush1.msra.mxu0 0.0
    %1902 = vmatprep.subr.mxu0 0.0
    %1903 = vmatpush1.msra.mxu0 0.0
    %1904 = vmatprep.subr.mxu0 0.0
    %1905 = vmatpush1.msra.mxu0 0.0
    %1906 = vmatprep.subr.mxu0 0.0
    %1907 = vmatpush1.msra.mxu0 0.0
    %1908 = vmatprep.subr.mxu0 0.0
    %1909 = vmatpush1.msra.mxu0 0.0
    %1910 = vmatprep.mubr.f32.mxu0 0.0
    %1911 = vmatmul.mubr.f32.gmra.mrb[0].mxu0 %v299
    %v1912 = vpop.f32.mrb[0].mxu0
    %v1913 = vadd.f32 0.0, %v1912
    %v1914 = vpop.f32.mrb[0].mxu0
    %1915 = vmatprep.mubr.f32.mxu0 0.0
    %1916 = vmatmul.mubr.f32.gmra.mrb[0].mxu0 %v302
    %v1917 = vpop.f32.mrb[0].mxu0
    %v1918 = vadd.f32 0.0, %v1917
    %v1919 = vpop.f32.mrb[0].mxu0
    %1920 = vmatprep.mubr.f32.mxu0 0.0
    %1921 = vmatmul.mubr.f32.gmra.mrb[0].mxu0 %v305
    %v1922 = vpop.f32.mrb[0].mxu0
    %v1923 = vadd.f32 0.0, %v1922
    %v1924 = vpop.f32.mrb[0].mxu0
    %1925 = vmatprep.mubr.f32.mxu0 0.0
    %1926 = vmatmul.mubr.f32.gmra.mrb[0].mxu0 %v308
    %v1927 = vpop.f32.mrb[0].mxu0
    %v1928 = vadd.f32 0.0, %v1927
    %v1929 = vpop.f32.mrb[0].mxu0
    %1930 = vmatprep.mubr.f32.mxu0 0.0
    %1931 = vmatmul.mubr.f32.gmra.mrb[0].mxu0 %v311
    %v1932 = vpop.f32.mrb[0].mxu0
    %v1933 = vadd.f32 0.0, %v1932
    %v1934 = vpop.f32.mrb[0].mxu0
    %1935 = vdwg.mxu0
    %1936 = vmatprep.subr.mxu0 0.0
    %1937 = vmatpush1.msra.mxu0 %v1830
    %1938 = vmatprep.subr.mxu0 0.0
    %1939 = vmatpush1.msra.mxu0 %v1835
    %1940 = vmatprep.subr.mxu0 0.0
    %1941 = vmatpush1.msra.mxu0 0.0
    %1942 = vmatprep.subr.mxu0 0.0
    %1943 = vmatpush1.msra.mxu0 0.0
    %1944 = vmatprep.subr.mxu0 0.0
    %1945 = vmatpush1.msra.mxu0 0.0
    %1946 = vmatprep.subr.mxu0 0.0
    %1947 = vmatpush1.msra.mxu0 0.0
    %1948 = vmatprep.subr.mxu0 0.0
    %1949 = vmatpush1.msra.mxu0 0.0
    %1950 = vmatprep.subr.mxu0 0.0
    %1951 = vmatpush1.msra.mxu0 0.0
    %1952 = vmatprep.subr.mxu0 0.0
    %1953 = vmatpush1.msra.mxu0 0.0
    %1954 = vmatprep.subr.mxu0 0.0
    %1955 = vmatpush1.msra.mxu0 0.0
    %1956 = vmatprep.subr.mxu0 0.0
    %1957 = vmatpush1.msra.mxu0 0.0
    %1958 = vmatprep.subr.mxu0 0.0
    %1959 = vmatpush1.msra.mxu0 0.0
    %1960 = vmatprep.subr.mxu0 0.0
    %1961 = vmatpush1.msra.mxu0 0.0
    %1962 = vmatprep.subr.mxu0 0.0
    %1963 = vmatpush1.msra.mxu0 0.0
    %1964 = vmatprep.subr.mxu0 0.0
    %1965 = vmatpush1.msra.mxu0 0.0
    %1966 = vmatprep.subr.mxu0 0.0
    %1967 = vmatpush1.msra.mxu0 0.0
    %1968 = vmatprep.subr.mxu0 0.0
    %1969 = vmatpush1.msra.mxu0 0.0
    %1970 = vmatprep.subr.mxu0 0.0
    %1971 = vmatpush1.msra.mxu0 0.0
    %1972 = vmatprep.subr.mxu0 0.0
    %1973 = vmatpush1.msra.mxu0 0.0
    %1974 = vmatprep.subr.mxu0 0.0
    %1975 = vmatpush1.msra.mxu0 0.0
    %1976 = vmatprep.subr.mxu0 0.0
    %1977 = vmatpush1.msra.mxu0 0.0
    %1978 = vmatprep.subr.mxu0 0.0
    %1979 = vmatpush1.msra.mxu0 0.0
    %1980 = vmatprep.subr.mxu0 0.0
    %1981 = vmatpush1.msra.mxu0 0.0
    %1982 = vmatprep.subr.mxu0 0.0
    %1983 = vmatpush1.msra.mxu0 0.0
    %1984 = vmatprep.subr.mxu0 0.0
    %1985 = vmatpush1.msra.mxu0 0.0
    %1986 = vmatprep.subr.mxu0 0.0
    %1987 = vmatpush1.msra.mxu0 0.0
    %1988 = vmatprep.subr.mxu0 0.0
    %1989 = vmatpush1.msra.mxu0 0.0
    %1990 = vmatprep.subr.mxu0 0.0
    %1991 = vmatpush1.msra.mxu0 0.0
    %1992 = vmatprep.subr.mxu0 0.0
    %1993 = vmatpush1.msra.mxu0 0.0
    %1994 = vmatprep.subr.mxu0 0.0
    %1995 = vmatpush1.msra.mxu0 0.0
    %1996 = vmatprep.subr.mxu0 0.0
    %1997 = vmatpush1.msra.mxu0 0.0
    %1998 = vmatprep.subr.mxu0 0.0
    %1999 = vmatpush1.msra.mxu0 0.0
    %2000 = vmatprep.mubr.f32.mxu0 0.0
    %2001 = vmatmul.mubr.f32.gmra.mrb[0].mxu0 %v404
    %v2002 = vpop.f32.mrb[0].mxu0
    %v2003 = vadd.f32 %v1913, %v2002
    %v2004 = vpop.f32.mrb[0].mxu0
    %2005 = vmatprep.mubr.f32.mxu0 0.0
    %2006 = vmatmul.mubr.f32.gmra.mrb[0].mxu0 %v407
    %v2007 = vpop.f32.mrb[0].mxu0
    %v2008 = vadd.f32 %v1918, %v2007
    %v2009 = vpop.f32.mrb[0].mxu0
    %2010 = vmatprep.mubr.f32.mxu0 0.0
    %2011 = vmatmul.mubr.f32.gmra.mrb[0].mxu0 %v410
    %v2012 = vpop.f32.mrb[0].mxu0
    %v2013 = vadd.f32 %v1923, %v2012
    %v2014 = vpop.f32.mrb[0].mxu0
    %2015 = vmatprep.mubr.f32.mxu0 0.0
    %2016 = vmatmul.mubr.f32.gmra.mrb[0].mxu0 %v413
    %v2017 = vpop.f32.mrb[0].mxu0
    %v2018 = vadd.f32 %v1928, %v2017
    %v2019 = vpop.f32.mrb[0].mxu0
    %2020 = vmatprep.mubr.f32.mxu0 0.0
    %2021 = vmatmul.mubr.f32.gmra.mrb[0].mxu0 %v416
    %v2022 = vpop.f32.mrb[0].mxu0
    %v2023 = vadd.f32 %v1933, %v2022
    %v2024 = vpop.f32.mrb[0].mxu0
    %2025 = vdwg.mxu0
    %v2026 = vstv %s1683
    %v2027 = vadd.f32 %v2003, %v2026
    %v2028 = vadd.f32 %v2008, %v2026
    %v2029 = vadd.f32 %v2013, %v2026
    %v2030 = vadd.f32 %v2018, %v2026
    %v2031 = vadd.f32 %v2023, %v2026
    %vm2032 = vcmp.gt.f32.partialorder %v2027, 0.0
    %vm2033 = vcmp.gt.f32.partialorder %v2028, 0.0
    %vm2034 = vcmp.gt.f32.partialorder %v2029, 0.0
    %vm2035 = vcmp.gt.f32.partialorder %v2030, 0.0
    %vm2036 = vcmp.gt.f32.partialorder %v2031, 0.0
    %v2037 = vmul.f32 %v2027, 0.2
    %v2038 = vmul.f32 %v2028, 0.2
    %v2039 = vmul.f32 %v2029, 0.2
    %v2040 = vmul.f32 %v2030, 0.2
    %v2041 = vmul.f32 %v2031, 0.2
    %v2042 = vsel %vm2032, %v2027, %v2037
    %v2043 = vsel %vm2033, %v2028, %v2038
    %v2044 = vsel %vm2034, %v2029, %v2039
    %v2045 = vsel %vm2035, %v2030, %v2040
    %v2046 = vsel %vm2036, %v2031, %v2041
    %v2047 = vsel %vm109, %v2042, -1e+30
    %v2048 = vsel %vm110, %v2043, -1e+30
    %v2049 = vsel %vm111, %v2044, -1e+30
    %v2050 = vsel %vm112, %v2045, -1e+30
    %v2051 = vsel %vm113, %v2046, -1e+30
    %2053 = vset.pattern.permute.xlu0 0
    %2054 = vperm.xlu0 %2053, %v2047
    %v2055 = vpop.permute.xlu0 %2054
    %2058 = vset.pattern.permute.xlu0 0
    %2059 = vperm.xlu0 %2058, %v2048
    %v2060 = vpop.permute.xlu0 %2059
    %2063 = vset.pattern.permute.xlu0 0
    %2064 = vperm.xlu0 %2063, %v2049
    %v2065 = vpop.permute.xlu0 %2064
    %2068 = vset.pattern.permute.xlu0 0
    %2069 = vperm.xlu0 %2068, %v2050
    %v2070 = vpop.permute.xlu0 %2069
    %2073 = vset.pattern.permute.xlu0 0
    %2074 = vperm.xlu0 %2073, %v2051
    %v2075 = vpop.permute.xlu0 %2074
    %v2077 = vsel %vm534, %v2055, -1e+30
    %v2078 = vsel %vm535, %v2060, -1e+30
    %v2079 = vsel %vm536, %v2065, -1e+30
    %v2080 = vsel %vm537, %v2070, -1e+30
    %v2081 = vsel %vm538, %v2075, -1e+30
    %v2082 = vsel %vm297, %v2077, -inf
    %v2083 = vsel %vm297, %v2078, -inf
    %v2084 = vsel %vm297, %v2079, -inf
    %v2085 = vsel %vm297, %v2080, -inf
    %v2086 = vsel %vm297, %v2081, -inf
    %v2087 = vmax.f32 %v2082, %v2086
    %v2088 = vmax.f32 %v2087, %v2083
    %v2089 = vmax.f32 %v2084, %v2085
    %v2090 = vmax.f32 %v2088, %v2089
    %v2091 = vrot.slane %v2090, 4
    %v2092 = vmax.f32 %v2090, %v2091
    %v2093 = vrot.slane %v2092, 2
    %v2094 = vmax.f32 %v2092, %v2093
    %v2095 = vrot.slane %v2094, 1
    %v2096 = vmax.f32 %v2094, %v2095
    %v2097 = vmul.f32 %v104, %v2096
    %v2098 = vmul.f32 %v105, %v2096
    %v2099 = vmul.f32 %v106, %v2096
    %v2100 = vmul.f32 %v107, %v2096
    %v2101 = vmul.f32 %v108, %v2096
    %v2102 = vsel %vm297, %v2097, 0.0
    %2103 = vadd.xlane.f32.xlu0 %v2102
    %v2104 = vpop.xlane.xlu0 %2103
    %v2105 = vsel %vm297, %v2098, 0.0
    %2106 = vadd.xlane.f32.xlu0 %v2105
    %v2107 = vpop.xlane.xlu0 %2106
    %v2108 = vsel %vm297, %v2099, 0.0
    %2109 = vadd.xlane.f32.xlu0 %v2108
    %v2110 = vpop.xlane.xlu0 %2109
    %v2111 = vsel %vm297, %v2100, 0.0
    %2112 = vadd.xlane.f32.xlu0 %v2111
    %v2113 = vpop.xlane.xlu0 %2112
    %v2114 = vsel %vm297, %v2101, 0.0
    %2115 = vadd.xlane.f32.xlu0 %v2114
    %v2116 = vpop.xlane.xlu0 %2115
    %v2117 = vsub.f32 %v2047, %v2104
    %v2118 = vsub.f32 %v2048, %v2107
    %v2119 = vsub.f32 %v2049, %v2110
    %v2120 = vsub.f32 %v2050, %v2113
    %v2121 = vsub.f32 %v2051, %v2116
    %v2122 = vmul.f32 %v2117, 1.442695
    %v2123 = vpow.pop %v2122
    %v2124 = vmul.f32 %v2118, 1.442695
    %v2125 = vpow.pop %v2124
    %v2126 = vmul.f32 %v2119, 1.442695
    %v2127 = vpow.pop %v2126
    %v2128 = vmul.f32 %v2120, 1.442695
    %v2129 = vpow.pop %v2128
    %v2130 = vmul.f32 %v2121, 1.442695
    %v2131 = vpow.pop %v2130
    %2133 = vset.pattern.permute.xlu0 0
    %2134 = vperm.xlu0 %2133, %v2123
    %v2135 = vpop.permute.xlu0 %2134
    %2138 = vset.pattern.permute.xlu0 0
    %2139 = vperm.xlu0 %2138, %v2125
    %v2140 = vpop.permute.xlu0 %2139
    %2143 = vset.pattern.permute.xlu0 0
    %2144 = vperm.xlu0 %2143, %v2127
    %v2145 = vpop.permute.xlu0 %2144
    %2148 = vset.pattern.permute.xlu0 0
    %2149 = vperm.xlu0 %2148, %v2129
    %v2150 = vpop.permute.xlu0 %2149
    %2153 = vset.pattern.permute.xlu0 0
    %2154 = vperm.xlu0 %2153, %v2131
    %v2155 = vpop.permute.xlu0 %2154
    %v2157 = vmul.f32 %v104, %v2135
    %v2158 = vmul.f32 %v105, %v2140
    %v2159 = vmul.f32 %v106, %v2145
    %v2160 = vmul.f32 %v107, %v2150
    %v2161 = vmul.f32 %v108, %v2155
    %v2162 = vsel %vm297, %v2157, 0.0
    %v2163 = vsel %vm297, %v2158, 0.0
    %v2164 = vadd.f32 %v2162, %v2163
    %v2165 = vsel %vm297, %v2159, 0.0
    %v2166 = vadd.f32 %v2164, %v2165
    %v2167 = vsel %vm297, %v2160, 0.0
    %v2168 = vadd.f32 %v2166, %v2167
    %v2169 = vsel %vm297, %v2161, 0.0
    %v2170 = vadd.f32 %v2168, %v2169
    %v2171 = vrot.slane %v2170, 4
    %v2172 = vadd.f32 %v2170, %v2171
    %v2173 = vrot.slane %v2172, 2
    %v2174 = vadd.f32 %v2172, %v2173
    %v2175 = vrot.slane %v2174, 1
    %v2176 = vadd.f32 %v2174, %v2175
    %vm2177 = vcmp.gt.f32.partialorder %v2176, 0.0
    %v2178 = vrcp.pop %v2176
    %v2179 = vsel %vm2177, %v2178, 0.0
    %v2180 = vmul.f32 %v104, %v2179
    %v2181 = vmul.f32 %v105, %v2179
    %v2182 = vmul.f32 %v106, %v2179
    %v2183 = vmul.f32 %v107, %v2179
    %v2184 = vmul.f32 %v108, %v2179
    %v2185 = vsel %vm297, %v2180, 0.0
    %2186 = vadd.xlane.f32.xlu0 %v2185
    %v2187 = vpop.xlane.xlu0 %2186
    %v2188 = vsel %vm297, %v2181, 0.0
    %2189 = vadd.xlane.f32.xlu0 %v2188
    %v2190 = vpop.xlane.xlu0 %2189
    %v2191 = vsel %vm297, %v2182, 0.0
    %2192 = vadd.xlane.f32.xlu0 %v2191
    %v2193 = vpop.xlane.xlu0 %2192
    %v2194 = vsel %vm297, %v2183, 0.0
    %2195 = vadd.xlane.f32.xlu0 %v2194
    %v2196 = vpop.xlane.xlu0 %2195
    %v2197 = vsel %vm297, %v2184, 0.0
    %2198 = vadd.xlane.f32.xlu0 %v2197
    %v2199 = vpop.xlane.xlu0 %2198
    %v2200 = vmul.f32 %v2123, %v2187
    %v2201 = vmul.f32 %v2125, %v2190
    %v2202 = vmul.f32 %v2127, %v2193
    %v2203 = vmul.f32 %v2129, %v2196
    %v2204 = vmul.f32 %v2131, %v2199
    %2205 = vmatprep.subr.mxu0 0.0
    %2206 = vmatpush1.msra.mxu0 %v1755
    %2207 = vmatprep.subr.mxu0 0.0
    %2208 = vmatpush1.msra.mxu0 %v1760
    %2209 = vmatprep.subr.mxu0 0.0
    %2210 = vmatpush1.msra.mxu0 0.0
    %2211 = vmatprep.subr.mxu0 0.0
    %2212 = vmatpush1.msra.mxu0 0.0
    %2213 = vmatprep.subr.mxu0 0.0
    %2214 = vmatpush1.msra.mxu0 0.0
    %2215 = vmatprep.subr.mxu0 0.0
    %2216 = vmatpush1.msra.mxu0 0.0
    %2217 = vmatprep.subr.mxu0 0.0
    %2218 = vmatpush1.msra.mxu0 0.0
    %2219 = vmatprep.subr.mxu0 0.0
    %2220 = vmatpush1.msra.mxu0 0.0
    %2221 = vmatprep.subr.mxu0 0.0
    %2222 = vmatpush1.msra.mxu0 0.0
    %2223 = vmatprep.subr.mxu0 0.0
    %2224 = vmatpush1.msra.mxu0 0.0
    %2225 = vmatprep.subr.mxu0 0.0
    %2226 = vmatpush1.msra.mxu0 0.0
    %2227 = vmatprep.subr.mxu0 0.0
    %2228 = vmatpush1.msra.mxu0 0.0
    %2229 = vmatprep.subr.mxu0 0.0
    %2230 = vmatpush1.msra.mxu0 0.0
    %2231 = vmatprep.subr.mxu0 0.0
    %2232 = vmatpush1.msra.mxu0 0.0
    %2233 = vmatprep.subr.mxu0 0.0
    %2234 = vmatpush1.msra.mxu0 0.0
    %2235 = vmatprep.subr.mxu0 0.0
    %2236 = vmatpush1.msra.mxu0 0.0
    %2237 = vmatprep.subr.mxu0 0.0
    %2238 = vmatpush1.msra.mxu0 0.0
    %2239 = vmatprep.subr.mxu0 0.0
    %2240 = vmatpush1.msra.mxu0 0.0
    %2241 = vmatprep.subr.mxu0 0.0
    %2242 = vmatpush1.msra.mxu0 0.0
    %2243 = vmatprep.subr.mxu0 0.0
    %2244 = vmatpush1.msra.mxu0 0.0
    %2245 = vmatprep.subr.mxu0 0.0
    %2246 = vmatpush1.msra.mxu0 0.0
    %2247 = vmatprep.subr.mxu0 0.0
    %2248 = vmatpush1.msra.mxu0 0.0
    %2249 = vmatprep.subr.mxu0 0.0
    %2250 = vmatpush1.msra.mxu0 0.0
    %2251 = vmatprep.subr.mxu0 0.0
    %2252 = vmatpush1.msra.mxu0 0.0
    %2253 = vmatprep.subr.mxu0 0.0
    %2254 = vmatpush1.msra.mxu0 0.0
    %2255 = vmatprep.subr.mxu0 0.0
    %2256 = vmatpush1.msra.mxu0 0.0
    %2257 = vmatprep.subr.mxu0 0.0
    %2258 = vmatpush1.msra.mxu0 0.0
    %2259 = vmatprep.subr.mxu0 0.0
    %2260 = vmatpush1.msra.mxu0 0.0
    %2261 = vmatprep.subr.mxu0 0.0
    %2262 = vmatpush1.msra.mxu0 0.0
    %2263 = vmatprep.subr.mxu0 0.0
    %2264 = vmatpush1.msra.mxu0 0.0
    %2265 = vmatprep.subr.mxu0 0.0
    %2266 = vmatpush1.msra.mxu0 0.0
    %2267 = vmatprep.subr.mxu0 0.0
    %2268 = vmatpush1.msra.mxu0 0.0
    %2269 = vmatprep.mubr.f32.mxu0 0.0
    %2270 = vmatmul.mubr.f32.gmra.mrb[0].mxu0 %v404
    %v2271 = vpop.f32.mrb[0].mxu0
    %v2272 = vadd.f32 0.0, %v2271
    %v2273 = vpop.f32.mrb[0].mxu0
    %2274 = vmatprep.mubr.f32.mxu0 0.0
    %2275 = vmatmul.mubr.f32.gmra.mrb[0].mxu0 %v407
    %v2276 = vpop.f32.mrb[0].mxu0
    %v2277 = vadd.f32 0.0, %v2276
    %v2278 = vpop.f32.mrb[0].mxu0
    %2279 = vmatprep.mubr.f32.mxu0 0.0
    %2280 = vmatmul.mubr.f32.gmra.mrb[0].mxu0 %v410
    %v2281 = vpop.f32.mrb[0].mxu0
    %v2282 = vadd.f32 0.0, %v2281
    %v2283 = vpop.f32.mrb[0].mxu0
    %2284 = vmatprep.mubr.f32.mxu0 0.0
    %2285 = vmatmul.mubr.f32.gmra.mrb[0].mxu0 %v413
    %v2286 = vpop.f32.mrb[0].mxu0
    %v2287 = vadd.f32 0.0, %v2286
    %v2288 = vpop.f32.mrb[0].mxu0
    %2289 = vmatprep.mubr.f32.mxu0 0.0
    %2290 = vmatmul.mubr.f32.gmra.mrb[0].mxu0 %v416
    %v2291 = vpop.f32.mrb[0].mxu0
    %v2292 = vadd.f32 0.0, %v2291
    %v2293 = vpop.f32.mrb[0].mxu0
    %2294 = vdwg.mxu0
    %2296 = vset.pattern.permute.xlu0 0
    %2297 = vperm.xlu0 %2296, %v2200
    %v2298 = vpop.permute.xlu0 %2297
    %2301 = vset.pattern.permute.xlu0 0
    %2302 = vperm.xlu0 %2301, %v2201
    %v2303 = vpop.permute.xlu0 %2302
    %2306 = vset.pattern.permute.xlu0 0
    %2307 = vperm.xlu0 %2306, %v2202
    %v2308 = vpop.permute.xlu0 %2307
    %2311 = vset.pattern.permute.xlu0 0
    %2312 = vperm.xlu0 %2311, %v2203
    %v2313 = vpop.permute.xlu0 %2312
    %2316 = vset.pattern.permute.xlu0 0
    %2317 = vperm.xlu0 %2316, %v2204
    %v2318 = vpop.permute.xlu0 %2317
    %v2320 = vmul.f32 %v2298, %v2272
    %v2321 = vmul.f32 %v2303, %v2277
    %v2322 = vmul.f32 %v2308, %v2282
    %v2323 = vmul.f32 %v2313, %v2287
    %v2324 = vmul.f32 %v2318, %v2292
    %2325 = vmatprep.subr.mxu0 0.0
    %2326 = vmatpush1.msra.mxu0 %v2320
    %2327 = vmatprep.subr.mxu0 0.0
    %2328 = vmatpush1.msra.mxu0 %v2321
    %2329 = vmatprep.subr.mxu0 0.0
    %2330 = vmatpush1.msra.mxu0 %v2322
    %2331 = vmatprep.subr.mxu0 0.0
    %2332 = vmatpush1.msra.mxu0 %v2323
    %2333 = vmatprep.subr.mxu0 0.0
    %2334 = vmatpush1.msra.mxu0 %v2324
    %2335 = vmatprep.subr.mxu0 0.0
    %2336 = vmatpush1.msra.mxu0 0.0
    %2337 = vmatprep.subr.mxu0 0.0
    %2338 = vmatpush1.msra.mxu0 0.0
    %2339 = vmatprep.subr.mxu0 0.0
    %2340 = vmatpush1.msra.mxu0 0.0
    %2341 = vmatprep.subr.mxu0 0.0
    %2342 = vmatpush1.msra.mxu0 0.0
    %2343 = vmatprep.subr.mxu0 0.0
    %2344 = vmatpush1.msra.mxu0 0.0
    %2345 = vmatprep.subr.mxu0 0.0
    %2346 = vmatpush1.msra.mxu0 0.0
    %2347 = vmatprep.subr.mxu0 0.0
    %2348 = vmatpush1.msra.mxu0 0.0
    %2349 = vmatprep.subr.mxu0 0.0
    %2350 = vmatpush1.msra.mxu0 0.0
    %2351 = vmatprep.subr.mxu0 0.0
    %2352 = vmatpush1.msra.mxu0 0.0
    %2353 = vmatprep.subr.mxu0 0.0
    %2354 = vmatpush1.msra.mxu0 0.0
    %2355 = vmatprep.subr.mxu0 0.0
    %2356 = vmatpush1.msra.mxu0 0.0
    %2357 = vmatprep.subr.mxu0 0.0
    %2358 = vmatpush1.msra.mxu0 0.0
    %2359 = vmatprep.subr.mxu0 0.0
    %2360 = vmatpush1.msra.mxu0 0.0
    %2361 = vmatprep.subr.mxu0 0.0
    %2362 = vmatpush1.msra.mxu0 0.0
    %2363 = vmatprep.subr.mxu0 0.0
    %2364 = vmatpush1.msra.mxu0 0.0
    %2365 = vmatprep.subr.mxu0 0.0
    %2366 = vmatpush1.msra.mxu0 0.0
    %2367 = vmatprep.subr.mxu0 0.0
    %2368 = vmatpush1.msra.mxu0 0.0
    %2369 = vmatprep.subr.mxu0 0.0
    %2370 = vmatpush1.msra.mxu0 0.0
    %2371 = vmatprep.subr.mxu0 0.0
    %2372 = vmatpush1.msra.mxu0 0.0
    %2373 = vmatprep.subr.mxu0 0.0
    %2374 = vmatpush1.msra.mxu0 0.0
    %2375 = vmatprep.subr.mxu0 0.0
    %2376 = vmatpush1.msra.mxu0 0.0
    %2377 = vmatprep.subr.mxu0 0.0
    %2378 = vmatpush1.msra.mxu0 0.0
    %2379 = vmatprep.subr.mxu0 0.0
    %2380 = vmatpush1.msra.mxu0 0.0
    %2381 = vmatprep.subr.mxu0 0.0
    %2382 = vmatpush1.msra.mxu0 0.0
    %2383 = vmatprep.subr.mxu0 0.0
    %2384 = vmatpush1.msra.mxu0 0.0
    %2385 = vmatprep.subr.mxu0 0.0
    %2386 = vmatpush1.msra.mxu0 0.0
    %2387 = vmatprep.subr.mxu0 0.0
    %2388 = vmatpush1.msra.mxu0 0.0
    %2389 = vmatprep.mubr.f32.mxu0 0.0
    %2390 = vmatmul.mubr.f32.gmra.mrb[0].mxu0 %v846
    %v2391 = vpop.f32.mrb[0].mxu0
    %v2392 = vadd.f32 0.0, %v2391
    %v2393 = vpop.f32.mrb[0].mxu0
    %2394 = vmatprep.mubr.f32.mxu0 0.0
    %2395 = vmatmul.mubr.f32.gmra.mrb[0].mxu0 %v849
    %v2396 = vpop.f32.mrb[0].mxu0
    %v2397 = vadd.f32 0.0, %v2396
    %v2398 = vpop.f32.mrb[0].mxu0
    %2399 = vdwg.mxu0
    %2400 = vst [vmem:[#allocation5] sm:$0xff] %v2392
    %2401 = vst [vmem:[#allocation5 + $0x8] sm:$0xff] %v2397
    // Predicated region
    $region30: #{_stack_forward.1} parent=1 // pred_check
      _
    $region31: #{_stack_forward.1} parent=1 // pred_check_branch
      %2403 = sbr.rel (0) target = $region33
    $region32: #{_stack_forward.1} parent=1 // pred_region
      %s2405 = ssub.s32 256, 256
      %2406 = vsyncadd [#allocation3], %s2405
      %s2407 = sshll.u32 [#allocation5], 4
      %s2408 = int_to_ptr.vmem [resolvable:$true] %s2407
      %2413 = dma.vmem_to_hbm [thread:$0]  %s2408, 256, %s6, [#allocation3], 128, 128, 8
    $region33: #{_stack_forward.1} parent=1 // pred_fallthru
      _
    // Predicated region
    $region34: #{_stack_forward.1} parent=1 // pred_check
      _
    $region35: #{_stack_forward.1} parent=1 // pred_check_branch
      %2415 = sbr.rel (0) target = $region37
    $region36: #{_stack_forward.1} parent=1 // pred_region
      %2416 = dma.done [#allocation3], 256
    $region37: #{_stack_forward.1} parent=1 // pred_fallthru
      _
    %2417 = vsyncpa [#allocation3], 1
    %2418 = vsyncpa [#allocation4], 1

</llo_original>
